<compile_context>
chip_gen: v5e
topology: v5e:2x2
jax: 0.10.0
libtpu: 0.0.40
codegen_flags: <defaults>
</compile_context>

<pallas_src>
import functools
import math

import jax
import jax.numpy as jnp
from jax.experimental import pallas as pl
from jax.experimental.pallas import tpu as pltpu


def _round_up(x, m):
    return (x + m - 1) // m * m


def _style_conv_kernel(w_ref, s_ref, x_ref, b_ref, o_ref, wdem_ref, patch_ref, *,
                       K, W, HW, PTH, n_sub, cin_pad, eps):
    # w_ref:     (CoT, CK)              f32 flattened conv weight (k-major, c-minor)
    # s_ref:     (1, 1, CK)             f32 per-batch style scale, tiled K^3 times
    # x_ref:     (1, 1, cin_pad, Wn)    bf16 overlapping input window for this P tile
    # b_ref:     (CoT, 1)               f32 bias tile
    # o_ref:     (1, CoT, PT)           bf16 output tile for this (b, c, p)
    # wdem_ref:  (CoT, CK)              bf16 persistent scratch: demodulated weight
    # patch_ref: (2, CK, PTH)           bf16 double-buffered on-chip im2col sub-tile
    p = pl.program_id(2)
    kkk = K * K * K

    @pl.when(p == 0)
    def _():
        # modulation + demodulation once per (batch, cout-tile); f32 math (v5e-safe)
        w = w_ref[...]                                   # (CoT, CK)
        s = s_ref[0]                                     # (1,  CK)
        w_mod = w * s
        var = jnp.sum(w_mod * w_mod, axis=1, keepdims=True)
        wdem_ref[...] = (w_mod * jax.lax.rsqrt(var + eps)).astype(jnp.bfloat16)

    def build_patch(sub, slot):
        # Build the (CK, PTH) im2col sub-tile from the window block.  All indices
        # are static Python ints, so slots are provably disjoint and the stores
        # can interleave with the matmul on the other slot.
        base = sub * PTH
        for k in range(kkk):
            kd = k // (K * K)
            kh = (k // K) % K
            kw = k % K
            off = base + kd * HW + kh * W + kw           # flat shift of this tap
            patch_ref[slot, k * cin_pad:(k + 1) * cin_pad, :] = (
                x_ref[0, 0, :, off:off + PTH])

    bias = b_ref[...]                                    # (CoT, 1) f32
    build_patch(0, 0)
    for h in range(n_sub):                               # static, small (n_sub = 2)
        if h + 1 < n_sub:
            build_patch(h + 1, (h + 1) % 2)              # overlaps with the dot below
        out = jnp.dot(wdem_ref[...], patch_ref[h % 2],
                      preferred_element_type=jnp.float32)
        o_ref[0, :, h * PTH:(h + 1) * PTH] = (out + bias).astype(o_ref.dtype)


def dmsr_style_conv(x, style, params, *, eps=1e-8, pt_max=1024, n_sub=2):
    """Forward pass of DMSRStyleConv: modulated, demodulated 3D conv (stride 1, VALID)."""
    weight = params["weight"]      # (C_out, C_in, K, K, K)
    bias = params["bias"]          # (1, C_out, 1, 1, 1)
    w_lin = params["style_w"]      # (C_in, style_size)
    b_lin = params["style_b"]      # (C_in,)

    B, C_in, D, H, W = x.shape
    C_out, _, K, _, _ = weight.shape
    Do, Ho, Wo = D - K + 1, H - K + 1, W - K + 1
    HW = H * W
    DHW = D * HW

    # ---------------- alignment / tiling choices ---------------------------
    cin_pad = _round_up(C_in, 8)
    Co_pad = _round_up(C_out, 8)
    if Co_pad > 128:                               # tile C_out when it is large
        Co_pad = _round_up(C_out, 128)
        CoT = 128
    else:
        CoT = Co_pad
    n_co = Co_pad // CoT
    CK = cin_pad * K ** 3                          # on-chip contraction size

    assert pt_max % (128 * n_sub) == 0
    PT = min(_round_up(DHW, 128 * n_sub), pt_max)  # lane tile per grid step
    PTH = PT // n_sub                              # sub-tile for patch double-buffer
    n_pt = (DHW + PT - 1) // PT
    N_out = n_pt * PT                              # padded flat output length
    off_max = (K - 1) * (HW + W + 1)               # largest flat tap offset
    OFFPAD = _round_up(off_max, 128)
    Wn = PT + OFFPAD                               # per-tile input window width
    L = N_out + OFFPAD                             # padded flat input length

    # ---------------- glue (cheap XLA): style Linear + layout prep ---------
    style_scale = style @ w_lin.T + b_lin                        # (B, C_in) f32
    ss = jnp.zeros((B, cin_pad), jnp.float32).at[:, :C_in].set(style_scale)
    s_exp = jnp.tile(ss[:, None, :], (1, K ** 3, 1)).reshape(B, 1, CK)

    # weight flattened k-major, c-minor to match the patch row order.
    w_t = jnp.transpose(weight, (0, 2, 3, 4, 1)).reshape(C_out, K ** 3, C_in)
    w_p = jnp.zeros((Co_pad, K ** 3, cin_pad), jnp.float32)
    w_p = w_p.at[:C_out, :, :C_in].set(w_t)
    w2d = w_p.reshape(Co_pad, CK)

    b2d = jnp.zeros((Co_pad, 1), jnp.float32).at[:C_out, 0].set(bias.reshape(C_out))

    # x: contiguous flatten of (D,H,W), bf16, zero-padded channels/lanes, then cut
    # into overlapping per-P-tile windows so the kernel needs no dynamic slicing.
    x_flat = x.reshape(B, C_in, DHW).astype(jnp.bfloat16)
    x_pad = jnp.zeros((B, cin_pad, L), jnp.bfloat16).at[:, :C_in, :DHW].set(x_flat)
    x_win = jnp.stack([x_pad[:, :, t * PT:t * PT + Wn] for t in range(n_pt)],
                      axis=1)                      # (B, n_pt, cin_pad, Wn)

    # ---------------- VMEM budget + cost estimate --------------------------
    blk_bytes = (2 * cin_pad * Wn * 2              # x window block (double-buffered)
                 + 2 * CoT * CK * 4                # weight block
                 + 2 * CK * 4 + 2 * CoT * 4        # style + bias blocks
                 + 2 * CoT * PT * 2                # output block (bf16)
                 + CoT * CK * 2                    # wdem scratch
                 + 2 * CK * PTH * 2                # patch double buffer
                 + (1 << 20))                      # slack
    try:
        cap = getattr(pltpu.get_tpu_info(), "vmem_capacity_bytes", None) or (64 << 20)
    except Exception:
        cap = 64 << 20
    vmem_limit = int(min(int(0.85 * cap), max(32 << 20, 2 * blk_bytes)))

    cost = pl.CostEstimate(
        flops=int(2 * B * Co_pad * CK * N_out),
        transcendentals=0,
        bytes_accessed=int(n_co * x_win.size * 2 + B * w2d.size * 4
                           + s_exp.size * 4 + b2d.size * 4
                           + B * Co_pad * N_out * 2))

    out = pl.pallas_call(
        functools.partial(_style_conv_kernel, K=K, W=W, HW=HW, PTH=PTH,
                          n_sub=n_sub, cin_pad=cin_pad, eps=eps),
        out_shape=jax.ShapeDtypeStruct((B, Co_pad, N_out), jnp.bfloat16),
        grid=(B, n_co, n_pt),
        in_specs=[
            pl.BlockSpec((CoT, CK), lambda b, c, p: (c, 0)),
            pl.BlockSpec((1, 1, CK), lambda b, c, p: (b, 0, 0)),
            pl.BlockSpec((1, 1, cin_pad, Wn), lambda b, c, p: (b, p, 0, 0)),
            pl.BlockSpec((CoT, 1), lambda b, c, p: (c, 0)),
        ],
        out_specs=pl.BlockSpec((1, CoT, PT), lambda b, c, p: (b, c, p)),
        scratch_shapes=[pltpu.VMEM((CoT, CK), jnp.bfloat16),
                        pltpu.VMEM((2, CK, PTH), jnp.bfloat16)],
        compiler_params=pltpu.CompilerParams(
            dimension_semantics=("parallel", "parallel", "arbitrary"),
            vmem_limit_bytes=vmem_limit),
        cost_estimate=cost,
    )(w2d, s_exp, x_win, b2d)

    # discard padded channels / invalid (h >= Ho, w >= Wo) voxels; back to f32.
    out = out[:, :C_out, :DHW].reshape(B, C_out, D, H, W)
    return out[:, :, :Do, :Ho, :Wo].astype(jnp.float32)


def init_params(key, channels_in, channels_out, kernel_size, style_size):
    """Deterministic, PyTorch-init-shaped parameters (kaiming_uniform a=0.25)."""
    k1, k2, k3, k4 = jax.random.split(key, 4)
    K = kernel_size
    fan_in = channels_in * K ** 3
    a = 0.25
    gain = math.sqrt(2.0 / (1.0 + a ** 2))
    bound_w = gain * math.sqrt(3.0 / fan_in)
    weight = jax.random.uniform(k1, (channels_out, channels_in, K, K, K),
                                jnp.float32, -bound_w, bound_w)
    bound_b = 1.0 / math.sqrt(fan_in)
    bias = jax.random.uniform(k2, (1, channels_out, 1, 1, 1),
                              jnp.float32, -bound_b, bound_b)
    bound_l = 1.0 / math.sqrt(style_size)
    style_w = jax.random.uniform(k3, (channels_in, style_size),
                                 jnp.float32, -bound_l, bound_l)
    style_b = jax.random.uniform(k4, (channels_in,),
                                 jnp.float32, -bound_l, bound_l)
    return dict(weight=weight, bias=bias, style_w=style_w, style_b=style_b)


def reference_forward(x, style, params, eps=1e-8, quantize=False):
    """Pure-JAX reference mirroring the PyTorch grouped-conv3d semantics.

    quantize=True applies the same bf16 rounding of (demodulated weight, x, output)
    that the kernel uses, isolating accumulation-order differences only.
    """
    weight, bias = params["weight"], params["bias"]
    w_lin, b_lin = params["style_w"], params["style_b"]
    B = x.shape[0]
    ss = style @ w_lin.T + b_lin
    w = weight[None] * ss[:, None, :, None, None, None]
    var = jnp.sum(w ** 2, axis=(2, 3, 4, 5), keepdims=True)
    w = w * jax.lax.rsqrt(var + eps)
    if quantize:
        w = w.astype(jnp.bfloat16).astype(jnp.float32)
        x = x.astype(jnp.bfloat16).astype(jnp.float32)
    outs = []
    for b in range(B):
        o = jax.lax.conv_general_dilated(
            x[b:b + 1], w[b], window_strides=(1, 1, 1), padding="VALID",
            dimension_numbers=("NCDHW", "OIDHW", "NCDHW"))
        outs.append(o)
    out = jnp.concatenate(outs, axis=0) + bias
    if quantize:
        out = out.astype(jnp.bfloat16).astype(jnp.float32)
    return out


def _check_case(case_id, B, C_in, C_out, K, S, G):
    kp, kx, ks = jax.random.split(jax.random.fold_in(jax.random.PRNGKey(0), case_id), 3)
    params = init_params(kp, C_in, C_out, K, S)
    x = jax.random.normal(kx, (B, C_in, G, G, G), jnp.float32)
    style = jax.random.normal(ks, (B, S), jnp.float32)

    out = jax.block_until_ready(dmsr_style_conv(x, style, params))
    Go = G - K + 1
    assert out.shape == (B, C_out, Go, Go, Go), out.shape

    # Tight check vs. a reference with identical bf16 operand/output rounding.
    ref_q = reference_forward(x, style, params, quantize=True)
    err_q = float(jnp.max(jnp.abs(out - ref_q)))
    assert jnp.allclose(out, ref_q, atol=2e-2, rtol=2e-2), err_q

    # Loose check vs. the full-precision module semantics (bf16 operand noise).
    ref_f = reference_forward(x, style, params, quantize=False)
    err_f = float(jnp.max(jnp.abs(out - ref_f)))
    assert jnp.allclose(out, ref_f, atol=1e-1, rtol=1e-1), err_f


if __name__ == "__main__":
    # case 0: single P tile on the grid (DHW = 512)
    _check_case(0, B=2, C_in=4, C_out=6, K=3, S=8, G=8)
    # case 1: multiple P tiles (DHW = 1728 -> 2 grid steps), non-multiple-of-8 channels
    _check_case(1, B=2, C_in=5, C_out=9, K=3, S=8, G=12)
    print("KERNEL_OK")
</pallas_src>

<mosaic_0001>
module attributes {stable_mosaic.version = 11 : i64} {
  func.func @_style_conv_kernel(%arg0: i32, %arg1: i32, %arg2: i32, %arg3: memref<8x216xf32, #tpu.memory_space<vmem>>, %arg4: memref<1x1x216xf32, #tpu.memory_space<vmem>>, %arg5: memref<1x1x8x768xbf16, #tpu.memory_space<vmem>>, %arg6: memref<8x1xf32, #tpu.memory_space<vmem>>, %arg7: memref<1x8x512xbf16, #tpu.memory_space<vmem>>, %arg8: memref<8x216xbf16, #tpu.memory_space<vmem>>, %arg9: memref<2x216x256xbf16, #tpu.memory_space<vmem>>) attributes {dimension_semantics = [#tpu.dimension_semantics<parallel>, #tpu.dimension_semantics<parallel>, #tpu.dimension_semantics<arbitrary>], iteration_bounds = array<i64: 2, 1, 1>, scalar_prefetch = 0 : i64, scratch_operands = 2 : i64, tpu.core_type = #tpu.core_type<tc>, window_params = [{transform_indices = @transform_0, window_bounds = array<i64: 8, 216>}, {transform_indices = @transform_1, window_bounds = array<i64: 1, 1, 216>}, {transform_indices = @transform_2, window_bounds = array<i64: 1, 1, 8, 768>}, {transform_indices = @transform_3, window_bounds = array<i64: 8, 1>}, {transform_indices = @transform_4, window_bounds = array<i64: 1, 8, 512>}]} {
    %c0_i32 = arith.constant 0 : i32
    %0 = arith.cmpi eq, %arg2, %c0_i32 : i32
    %1 = arith.extui %0 : i1 to i32
    %c0_i32_0 = arith.constant 0 : i32
    %2 = arith.cmpi ne, %1, %c0_i32_0 : i32
    scf.if %2 {
      %c0_326 = arith.constant 0 : index
      %c0_327 = arith.constant 0 : index
      %294 = vector.load %arg3[%c0_326, %c0_327] : memref<8x216xf32, #tpu.memory_space<vmem>>, vector<8x216xf32>
      %c0_328 = arith.constant 0 : index
      %c0_329 = arith.constant 0 : index
      %c0_330 = arith.constant 0 : index
      %295 = vector.load %arg4[%c0_328, %c0_329, %c0_330] : memref<1x1x216xf32, #tpu.memory_space<vmem>>, vector<1x1x216xf32>
      %296 = vector.shape_cast %295 : vector<1x1x216xf32> to vector<1x216xf32>
      %297 = vector.broadcast %296 : vector<1x216xf32> to vector<8x216xf32>
      %298 = arith.mulf %294, %297 : vector<8x216xf32>
      %299 = arith.mulf %298, %298 : vector<8x216xf32>
      %cst_331 = arith.constant dense<0.000000e+00> : vector<8xf32>
      %300 = vector.multi_reduction <add>, %299, %cst_331 [1] : vector<8x216xf32> to vector<8xf32>
      %301 = vector.shape_cast %300 : vector<8xf32> to vector<8x1xf32>
      %cst_332 = arith.constant 9.99999993E-9 : f32
      %302 = vector.broadcast %cst_332 : f32 to vector<8x1xf32>
      %303 = arith.addf %301, %302 : vector<8x1xf32>
      %304 = math.rsqrt %303 : vector<8x1xf32>
      %305 = vector.broadcast %304 : vector<8x1xf32> to vector<8x216xf32>
      %306 = arith.mulf %298, %305 : vector<8x216xf32>
      %307 = arith.truncf %306 : vector<8x216xf32> to vector<8x216xbf16>
      %c0_333 = arith.constant 0 : index
      %c0_334 = arith.constant 0 : index
      %308 = vector.load %arg8[%c0_333, %c0_334] : memref<8x216xbf16, #tpu.memory_space<vmem>>, vector<8x216xbf16>
      tpu.vector_store %arg8[%c0_333, %c0_334], %307 {strides = array<i32>} : memref<8x216xbf16, #tpu.memory_space<vmem>>, vector<8x216xbf16>,
    } else {
    }
    %c0 = arith.constant 0 : index
    %c0_1 = arith.constant 0 : index
    %3 = vector.load %arg6[%c0, %c0_1] : memref<8x1xf32, #tpu.memory_space<vmem>>, vector<8x1xf32>
    %c0_2 = arith.constant 0 : index
    %c0_3 = arith.constant 0 : index
    %c0_4 = arith.constant 0 : index
    %c0_5 = arith.constant 0 : index
    %4 = vector.load %arg5[%c0_2, %c0_3, %c0_4, %c0_5] : memref<1x1x8x768xbf16, #tpu.memory_space<vmem>>, vector<1x1x8x256xbf16>
    %5 = vector.shape_cast %4 : vector<1x1x8x256xbf16> to vector<8x256xbf16>
    %c0_6 = arith.constant 0 : index
    %c0_7 = arith.constant 0 : index
    %c0_8 = arith.constant 0 : index
    %6 = vector.load %arg9[%c0_6, %c0_7, %c0_8] : memref<2x216x256xbf16, #tpu.memory_space<vmem>>, vector<1x8x256xbf16>
    %7 = vector.shape_cast %6 : vector<1x8x256xbf16> to vector<8x256xbf16>
    %8 = vector.shape_cast %5 : vector<8x256xbf16> to vector<1x8x256xbf16>
    tpu.vector_store %arg9[%c0_6, %c0_7, %c0_8], %8 {strides = array<i32>} : memref<2x216x256xbf16, #tpu.memory_space<vmem>>, vector<1x8x256xbf16>,
    %c0_9 = arith.constant 0 : index
    %c0_10 = arith.constant 0 : index
    %c0_11 = arith.constant 0 : index
    %c1 = arith.constant 1 : index
    %9 = vector.load %arg5[%c0_9, %c0_10, %c0_11, %c1] : memref<1x1x8x768xbf16, #tpu.memory_space<vmem>>, vector<1x1x8x256xbf16>
    %10 = vector.shape_cast %9 : vector<1x1x8x256xbf16> to vector<8x256xbf16>
    %c0_12 = arith.constant 0 : index
    %c8 = arith.constant 8 : index
    %c0_13 = arith.constant 0 : index
    %11 = vector.load %arg9[%c0_12, %c8, %c0_13] : memref<2x216x256xbf16, #tpu.memory_space<vmem>>, vector<1x8x256xbf16>
    %12 = vector.shape_cast %11 : vector<1x8x256xbf16> to vector<8x256xbf16>
    %13 = vector.shape_cast %10 : vector<8x256xbf16> to vector<1x8x256xbf16>
    tpu.vector_store %arg9[%c0_12, %c8, %c0_13], %13 {strides = array<i32>} : memref<2x216x256xbf16, #tpu.memory_space<vmem>>, vector<1x8x256xbf16>,
    %c0_14 = arith.constant 0 : index
    %c0_15 = arith.constant 0 : index
    %c0_16 = arith.constant 0 : index
    %c2 = arith.constant 2 : index
    %14 = vector.load %arg5[%c0_14, %c0_15, %c0_16, %c2] : memref<1x1x8x768xbf16, #tpu.memory_space<vmem>>, vector<1x1x8x256xbf16>
    %15 = vector.shape_cast %14 : vector<1x1x8x256xbf16> to vector<8x256xbf16>
    %c0_17 = arith.constant 0 : index
    %c16 = arith.constant 16 : index
    %c0_18 = arith.constant 0 : index
    %16 = vector.load %arg9[%c0_17, %c16, %c0_18] : memref<2x216x256xbf16, #tpu.memory_space<vmem>>, vector<1x8x256xbf16>
    %17 = vector.shape_cast %16 : vector<1x8x256xbf16> to vector<8x256xbf16>
    %18 = vector.shape_cast %15 : vector<8x256xbf16> to vector<1x8x256xbf16>
    tpu.vector_store %arg9[%c0_17, %c16, %c0_18], %18 {strides = array<i32>} : memref<2x216x256xbf16, #tpu.memory_space<vmem>>, vector<1x8x256xbf16>,
    %c0_19 = arith.constant 0 : index
    %c0_20 = arith.constant 0 : index
    %c0_21 = arith.constant 0 : index
    %c8_22 = arith.constant 8 : index
    %19 = vector.load %arg5[%c0_19, %c0_20, %c0_21, %c8_22] : memref<1x1x8x768xbf16, #tpu.memory_space<vmem>>, vector<1x1x8x256xbf16>
    %20 = vector.shape_cast %19 : vector<1x1x8x256xbf16> to vector<8x256xbf16>
    %c0_23 = arith.constant 0 : index
    %c24 = arith.constant 24 : index
    %c0_24 = arith.constant 0 : index
    %21 = vector.load %arg9[%c0_23, %c24, %c0_24] : memref<2x216x256xbf16, #tpu.memory_space<vmem>>, vector<1x8x256xbf16>
    %22 = vector.shape_cast %21 : vector<1x8x256xbf16> to vector<8x256xbf16>
    %23 = vector.shape_cast %20 : vector<8x256xbf16> to vector<1x8x256xbf16>
    tpu.vector_store %arg9[%c0_23, %c24, %c0_24], %23 {strides = array<i32>} : memref<2x216x256xbf16, #tpu.memory_space<vmem>>, vector<1x8x256xbf16>,
    %c0_25 = arith.constant 0 : index
    %c0_26 = arith.constant 0 : index
    %c0_27 = arith.constant 0 : index
    %c9 = arith.constant 9 : index
    %24 = vector.load %arg5[%c0_25, %c0_26, %c0_27, %c9] : memref<1x1x8x768xbf16, #tpu.memory_space<vmem>>, vector<1x1x8x256xbf16>
    %25 = vector.shape_cast %24 : vector<1x1x8x256xbf16> to vector<8x256xbf16>
    %c0_28 = arith.constant 0 : index
    %c32 = arith.constant 32 : index
    %c0_29 = arith.constant 0 : index
    %26 = vector.load %arg9[%c0_28, %c32, %c0_29] : memref<2x216x256xbf16, #tpu.memory_space<vmem>>, vector<1x8x256xbf16>
    %27 = vector.shape_cast %26 : vector<1x8x256xbf16> to vector<8x256xbf16>
    %28 = vector.shape_cast %25 : vector<8x256xbf16> to vector<1x8x256xbf16>
    tpu.vector_store %arg9[%c0_28, %c32, %c0_29], %28 {strides = array<i32>} : memref<2x216x256xbf16, #tpu.memory_space<vmem>>, vector<1x8x256xbf16>,
    %c0_30 = arith.constant 0 : index
    %c0_31 = arith.constant 0 : index
    %c0_32 = arith.constant 0 : index
    %c10 = arith.constant 10 : index
    %29 = vector.load %arg5[%c0_30, %c0_31, %c0_32, %c10] : memref<1x1x8x768xbf16, #tpu.memory_space<vmem>>, vector<1x1x8x256xbf16>
    %30 = vector.shape_cast %29 : vector<1x1x8x256xbf16> to vector<8x256xbf16>
    %c0_33 = arith.constant 0 : index
    %c40 = arith.constant 40 : index
    %c0_34 = arith.constant 0 : index
    %31 = vector.load %arg9[%c0_33, %c40, %c0_34] : memref<2x216x256xbf16, #tpu.memory_space<vmem>>, vector<1x8x256xbf16>
    %32 = vector.shape_cast %31 : vector<1x8x256xbf16> to vector<8x256xbf16>
    %33 = vector.shape_cast %30 : vector<8x256xbf16> to vector<1x8x256xbf16>
    tpu.vector_store %arg9[%c0_33, %c40, %c0_34], %33 {strides = array<i32>} : memref<2x216x256xbf16, #tpu.memory_space<vmem>>, vector<1x8x256xbf16>,
    %c0_35 = arith.constant 0 : index
    %c0_36 = arith.constant 0 : index
    %c0_37 = arith.constant 0 : index
    %c16_38 = arith.constant 16 : index
    %34 = vector.load %arg5[%c0_35, %c0_36, %c0_37, %c16_38] : memref<1x1x8x768xbf16, #tpu.memory_space<vmem>>, vector<1x1x8x256xbf16>
    %35 = vector.shape_cast %34 : vector<1x1x8x256xbf16> to vector<8x256xbf16>
    %c0_39 = arith.constant 0 : index
    %c48 = arith.constant 48 : index
    %c0_40 = arith.constant 0 : index
    %36 = vector.load %arg9[%c0_39, %c48, %c0_40] : memref<2x216x256xbf16, #tpu.memory_space<vmem>>, vector<1x8x256xbf16>
    %37 = vector.shape_cast %36 : vector<1x8x256xbf16> to vector<8x256xbf16>
    %38 = vector.shape_cast %35 : vector<8x256xbf16> to vector<1x8x256xbf16>
    tpu.vector_store %arg9[%c0_39, %c48, %c0_40], %38 {strides = array<i32>} : memref<2x216x256xbf16, #tpu.memory_space<vmem>>, vector<1x8x256xbf16>,
    %c0_41 = arith.constant 0 : index
    %c0_42 = arith.constant 0 : index
    %c0_43 = arith.constant 0 : index
    %c17 = arith.constant 17 : index
    %39 = vector.load %arg5[%c0_41, %c0_42, %c0_43, %c17] : memref<1x1x8x768xbf16, #tpu.memory_space<vmem>>, vector<1x1x8x256xbf16>
    %40 = vector.shape_cast %39 : vector<1x1x8x256xbf16> to vector<8x256xbf16>
    %c0_44 = arith.constant 0 : index
    %c56 = arith.constant 56 : index
    %c0_45 = arith.constant 0 : index
    %41 = vector.load %arg9[%c0_44, %c56, %c0_45] : memref<2x216x256xbf16, #tpu.memory_space<vmem>>, vector<1x8x256xbf16>
    %42 = vector.shape_cast %41 : vector<1x8x256xbf16> to vector<8x256xbf16>
    %43 = vector.shape_cast %40 : vector<8x256xbf16> to vector<1x8x256xbf16>
    tpu.vector_store %arg9[%c0_44, %c56, %c0_45], %43 {strides = array<i32>} : memref<2x216x256xbf16, #tpu.memory_space<vmem>>, vector<1x8x256xbf16>,
    %c0_46 = arith.constant 0 : index
    %c0_47 = arith.constant 0 : index
    %c0_48 = arith.constant 0 : index
    %c18 = arith.constant 18 : index
    %44 = vector.load %arg5[%c0_46, %c0_47, %c0_48, %c18] : memref<1x1x8x768xbf16, #tpu.memory_space<vmem>>, vector<1x1x8x256xbf16>
    %45 = vector.shape_cast %44 : vector<1x1x8x256xbf16> to vector<8x256xbf16>
    %c0_49 = arith.constant 0 : index
    %c64 = arith.constant 64 : index
    %c0_50 = arith.constant 0 : index
    %46 = vector.load %arg9[%c0_49, %c64, %c0_50] : memref<2x216x256xbf16, #tpu.memory_space<vmem>>, vector<1x8x256xbf16>
    %47 = vector.shape_cast %46 : vector<1x8x256xbf16> to vector<8x256xbf16>
    %48 = vector.shape_cast %45 : vector<8x256xbf16> to vector<1x8x256xbf16>
    tpu.vector_store %arg9[%c0_49, %c64, %c0_50], %48 {strides = array<i32>} : memref<2x216x256xbf16, #tpu.memory_space<vmem>>, vector<1x8x256xbf16>,
    %c0_51 = arith.constant 0 : index
    %c0_52 = arith.constant 0 : index
    %c0_53 = arith.constant 0 : index
    %c64_54 = arith.constant 64 : index
    %49 = vector.load %arg5[%c0_51, %c0_52, %c0_53, %c64_54] : memref<1x1x8x768xbf16, #tpu.memory_space<vmem>>, vector<1x1x8x256xbf16>
    %50 = vector.shape_cast %49 : vector<1x1x8x256xbf16> to vector<8x256xbf16>
    %c0_55 = arith.constant 0 : index
    %c72 = arith.constant 72 : index
    %c0_56 = arith.constant 0 : index
    %51 = vector.load %arg9[%c0_55, %c72, %c0_56] : memref<2x216x256xbf16, #tpu.memory_space<vmem>>, vector<1x8x256xbf16>
    %52 = vector.shape_cast %51 : vector<1x8x256xbf16> to vector<8x256xbf16>
    %53 = vector.shape_cast %50 : vector<8x256xbf16> to vector<1x8x256xbf16>
    tpu.vector_store %arg9[%c0_55, %c72, %c0_56], %53 {strides = array<i32>} : memref<2x216x256xbf16, #tpu.memory_space<vmem>>, vector<1x8x256xbf16>,
    %c0_57 = arith.constant 0 : index
    %c0_58 = arith.constant 0 : index
    %c0_59 = arith.constant 0 : index
    %c65 = arith.constant 65 : index
    %54 = vector.load %arg5[%c0_57, %c0_58, %c0_59, %c65] : memref<1x1x8x768xbf16, #tpu.memory_space<vmem>>, vector<1x1x8x256xbf16>
    %55 = vector.shape_cast %54 : vector<1x1x8x256xbf16> to vector<8x256xbf16>
    %c0_60 = arith.constant 0 : index
    %c80 = arith.constant 80 : index
    %c0_61 = arith.constant 0 : index
    %56 = vector.load %arg9[%c0_60, %c80, %c0_61] : memref<2x216x256xbf16, #tpu.memory_space<vmem>>, vector<1x8x256xbf16>
    %57 = vector.shape_cast %56 : vector<1x8x256xbf16> to vector<8x256xbf16>
    %58 = vector.shape_cast %55 : vector<8x256xbf16> to vector<1x8x256xbf16>
    tpu.vector_store %arg9[%c0_60, %c80, %c0_61], %58 {strides = array<i32>} : memref<2x216x256xbf16, #tpu.memory_space<vmem>>, vector<1x8x256xbf16>,
    %c0_62 = arith.constant 0 : index
    %c0_63 = arith.constant 0 : index
    %c0_64 = arith.constant 0 : index
    %c66 = arith.constant 66 : index
    %59 = vector.load %arg5[%c0_62, %c0_63, %c0_64, %c66] : memref<1x1x8x768xbf16, #tpu.memory_space<vmem>>, vector<1x1x8x256xbf16>
    %60 = vector.shape_cast %59 : vector<1x1x8x256xbf16> to vector<8x256xbf16>
    %c0_65 = arith.constant 0 : index
    %c88 = arith.constant 88 : index
    %c0_66 = arith.constant 0 : index
    %61 = vector.load %arg9[%c0_65, %c88, %c0_66] : memref<2x216x256xbf16, #tpu.memory_space<vmem>>, vector<1x8x256xbf16>
    %62 = vector.shape_cast %61 : vector<1x8x256xbf16> to vector<8x256xbf16>
    %63 = vector.shape_cast %60 : vector<8x256xbf16> to vector<1x8x256xbf16>
    tpu.vector_store %arg9[%c0_65, %c88, %c0_66], %63 {strides = array<i32>} : memref<2x216x256xbf16, #tpu.memory_space<vmem>>, vector<1x8x256xbf16>,
    %c0_67 = arith.constant 0 : index
    %c0_68 = arith.constant 0 : index
    %c0_69 = arith.constant 0 : index
    %c72_70 = arith.constant 72 : index
    %64 = vector.load %arg5[%c0_67, %c0_68, %c0_69, %c72_70] : memref<1x1x8x768xbf16, #tpu.memory_space<vmem>>, vector<1x1x8x256xbf16>
    %65 = vector.shape_cast %64 : vector<1x1x8x256xbf16> to vector<8x256xbf16>
    %c0_71 = arith.constant 0 : index
    %c96 = arith.constant 96 : index
    %c0_72 = arith.constant 0 : index
    %66 = vector.load %arg9[%c0_71, %c96, %c0_72] : memref<2x216x256xbf16, #tpu.memory_space<vmem>>, vector<1x8x256xbf16>
    %67 = vector.shape_cast %66 : vector<1x8x256xbf16> to vector<8x256xbf16>
    %68 = vector.shape_cast %65 : vector<8x256xbf16> to vector<1x8x256xbf16>
    tpu.vector_store %arg9[%c0_71, %c96, %c0_72], %68 {strides = array<i32>} : memref<2x216x256xbf16, #tpu.memory_space<vmem>>, vector<1x8x256xbf16>,
    %c0_73 = arith.constant 0 : index
    %c0_74 = arith.constant 0 : index
    %c0_75 = arith.constant 0 : index
    %c73 = arith.constant 73 : index
    %69 = vector.load %arg5[%c0_73, %c0_74, %c0_75, %c73] : memref<1x1x8x768xbf16, #tpu.memory_space<vmem>>, vector<1x1x8x256xbf16>
    %70 = vector.shape_cast %69 : vector<1x1x8x256xbf16> to vector<8x256xbf16>
    %c0_76 = arith.constant 0 : index
    %c104 = arith.constant 104 : index
    %c0_77 = arith.constant 0 : index
    %71 = vector.load %arg9[%c0_76, %c104, %c0_77] : memref<2x216x256xbf16, #tpu.memory_space<vmem>>, vector<1x8x256xbf16>
    %72 = vector.shape_cast %71 : vector<1x8x256xbf16> to vector<8x256xbf16>
    %73 = vector.shape_cast %70 : vector<8x256xbf16> to vector<1x8x256xbf16>
    tpu.vector_store %arg9[%c0_76, %c104, %c0_77], %73 {strides = array<i32>} : memref<2x216x256xbf16, #tpu.memory_space<vmem>>, vector<1x8x256xbf16>,
    %c0_78 = arith.constant 0 : index
    %c0_79 = arith.constant 0 : index
    %c0_80 = arith.constant 0 : index
    %c74 = arith.constant 74 : index
    %74 = vector.load %arg5[%c0_78, %c0_79, %c0_80, %c74] : memref<1x1x8x768xbf16, #tpu.memory_space<vmem>>, vector<1x1x8x256xbf16>
    %75 = vector.shape_cast %74 : vector<1x1x8x256xbf16> to vector<8x256xbf16>
    %c0_81 = arith.constant 0 : index
    %c112 = arith.constant 112 : index
    %c0_82 = arith.constant 0 : index
    %76 = vector.load %arg9[%c0_81, %c112, %c0_82] : memref<2x216x256xbf16, #tpu.memory_space<vmem>>, vector<1x8x256xbf16>
    %77 = vector.shape_cast %76 : vector<1x8x256xbf16> to vector<8x256xbf16>
    %78 = vector.shape_cast %75 : vector<8x256xbf16> to vector<1x8x256xbf16>
    tpu.vector_store %arg9[%c0_81, %c112, %c0_82], %78 {strides = array<i32>} : memref<2x216x256xbf16, #tpu.memory_space<vmem>>, vector<1x8x256xbf16>,
    %c0_83 = arith.constant 0 : index
    %c0_84 = arith.constant 0 : index
    %c0_85 = arith.constant 0 : index
    %c80_86 = arith.constant 80 : index
    %79 = vector.load %arg5[%c0_83, %c0_84, %c0_85, %c80_86] : memref<1x1x8x768xbf16, #tpu.memory_space<vmem>>, vector<1x1x8x256xbf16>
    %80 = vector.shape_cast %79 : vector<1x1x8x256xbf16> to vector<8x256xbf16>
    %c0_87 = arith.constant 0 : index
    %c120 = arith.constant 120 : index
    %c0_88 = arith.constant 0 : index
    %81 = vector.load %arg9[%c0_87, %c120, %c0_88] : memref<2x216x256xbf16, #tpu.memory_space<vmem>>, vector<1x8x256xbf16>
    %82 = vector.shape_cast %81 : vector<1x8x256xbf16> to vector<8x256xbf16>
    %83 = vector.shape_cast %80 : vector<8x256xbf16> to vector<1x8x256xbf16>
    tpu.vector_store %arg9[%c0_87, %c120, %c0_88], %83 {strides = array<i32>} : memref<2x216x256xbf16, #tpu.memory_space<vmem>>, vector<1x8x256xbf16>,
    %c0_89 = arith.constant 0 : index
    %c0_90 = arith.constant 0 : index
    %c0_91 = arith.constant 0 : index
    %c81 = arith.constant 81 : index
    %84 = vector.load %arg5[%c0_89, %c0_90, %c0_91, %c81] : memref<1x1x8x768xbf16, #tpu.memory_space<vmem>>, vector<1x1x8x256xbf16>
    %85 = vector.shape_cast %84 : vector<1x1x8x256xbf16> to vector<8x256xbf16>
    %c0_92 = arith.constant 0 : index
    %c128 = arith.constant 128 : index
    %c0_93 = arith.constant 0 : index
    %86 = vector.load %arg9[%c0_92, %c128, %c0_93] : memref<2x216x256xbf16, #tpu.memory_space<vmem>>, vector<1x8x256xbf16>
    %87 = vector.shape_cast %86 : vector<1x8x256xbf16> to vector<8x256xbf16>
    %88 = vector.shape_cast %85 : vector<8x256xbf16> to vector<1x8x256xbf16>
    tpu.vector_store %arg9[%c0_92, %c128, %c0_93], %88 {strides = array<i32>} : memref<2x216x256xbf16, #tpu.memory_space<vmem>>, vector<1x8x256xbf16>,
    %c0_94 = arith.constant 0 : index
    %c0_95 = arith.constant 0 : index
    %c0_96 = arith.constant 0 : index
    %c82 = arith.constant 82 : index
    %89 = vector.load %arg5[%c0_94, %c0_95, %c0_96, %c82] : memref<1x1x8x768xbf16, #tpu.memory_space<vmem>>, vector<1x1x8x256xbf16>
    %90 = vector.shape_cast %89 : vector<1x1x8x256xbf16> to vector<8x256xbf16>
    %c0_97 = arith.constant 0 : index
    %c136 = arith.constant 136 : index
    %c0_98 = arith.constant 0 : index
    %91 = vector.load %arg9[%c0_97, %c136, %c0_98] : memref<2x216x256xbf16, #tpu.memory_space<vmem>>, vector<1x8x256xbf16>
    %92 = vector.shape_cast %91 : vector<1x8x256xbf16> to vector<8x256xbf16>
    %93 = vector.shape_cast %90 : vector<8x256xbf16> to vector<1x8x256xbf16>
    tpu.vector_store %arg9[%c0_97, %c136, %c0_98], %93 {strides = array<i32>} : memref<2x216x256xbf16, #tpu.memory_space<vmem>>, vector<1x8x256xbf16>,
    %c0_99 = arith.constant 0 : index
    %c0_100 = arith.constant 0 : index
    %c0_101 = arith.constant 0 : index
    %c128_102 = arith.constant 128 : index
    %94 = vector.load %arg5[%c0_99, %c0_100, %c0_101, %c128_102] : memref<1x1x8x768xbf16, #tpu.memory_space<vmem>>, vector<1x1x8x256xbf16>
    %95 = vector.shape_cast %94 : vector<1x1x8x256xbf16> to vector<8x256xbf16>
    %c0_103 = arith.constant 0 : index
    %c144 = arith.constant 144 : index
    %c0_104 = arith.constant 0 : index
    %96 = vector.load %arg9[%c0_103, %c144, %c0_104] : memref<2x216x256xbf16, #tpu.memory_space<vmem>>, vector<1x8x256xbf16>
    %97 = vector.shape_cast %96 : vector<1x8x256xbf16> to vector<8x256xbf16>
    %98 = vector.shape_cast %95 : vector<8x256xbf16> to vector<1x8x256xbf16>
    tpu.vector_store %arg9[%c0_103, %c144, %c0_104], %98 {strides = array<i32>} : memref<2x216x256xbf16, #tpu.memory_space<vmem>>, vector<1x8x256xbf16>,
    %c0_105 = arith.constant 0 : index
    %c0_106 = arith.constant 0 : index
    %c0_107 = arith.constant 0 : index
    %c129 = arith.constant 129 : index
    %99 = vector.load %arg5[%c0_105, %c0_106, %c0_107, %c129] : memref<1x1x8x768xbf16, #tpu.memory_space<vmem>>, vector<1x1x8x256xbf16>
    %100 = vector.shape_cast %99 : vector<1x1x8x256xbf16> to vector<8x256xbf16>
    %c0_108 = arith.constant 0 : index
    %c152 = arith.constant 152 : index
    %c0_109 = arith.constant 0 : index
    %101 = vector.load %arg9[%c0_108, %c152, %c0_109] : memref<2x216x256xbf16, #tpu.memory_space<vmem>>, vector<1x8x256xbf16>
    %102 = vector.shape_cast %101 : vector<1x8x256xbf16> to vector<8x256xbf16>
    %103 = vector.shape_cast %100 : vector<8x256xbf16> to vector<1x8x256xbf16>
    tpu.vector_store %arg9[%c0_108, %c152, %c0_109], %103 {strides = array<i32>} : memref<2x216x256xbf16, #tpu.memory_space<vmem>>, vector<1x8x256xbf16>,
    %c0_110 = arith.constant 0 : index
    %c0_111 = arith.constant 0 : index
    %c0_112 = arith.constant 0 : index
    %c130 = arith.constant 130 : index
    %104 = vector.load %arg5[%c0_110, %c0_111, %c0_112, %c130] : memref<1x1x8x768xbf16, #tpu.memory_space<vmem>>, vector<1x1x8x256xbf16>
    %105 = vector.shape_cast %104 : vector<1x1x8x256xbf16> to vector<8x256xbf16>
    %c0_113 = arith.constant 0 : index
    %c160 = arith.constant 160 : index
    %c0_114 = arith.constant 0 : index
    %106 = vector.load %arg9[%c0_113, %c160, %c0_114] : memref<2x216x256xbf16, #tpu.memory_space<vmem>>, vector<1x8x256xbf16>
    %107 = vector.shape_cast %106 : vector<1x8x256xbf16> to vector<8x256xbf16>
    %108 = vector.shape_cast %105 : vector<8x256xbf16> to vector<1x8x256xbf16>
    tpu.vector_store %arg9[%c0_113, %c160, %c0_114], %108 {strides = array<i32>} : memref<2x216x256xbf16, #tpu.memory_space<vmem>>, vector<1x8x256xbf16>,
    %c0_115 = arith.constant 0 : index
    %c0_116 = arith.constant 0 : index
    %c0_117 = arith.constant 0 : index
    %c136_118 = arith.constant 136 : index
    %109 = vector.load %arg5[%c0_115, %c0_116, %c0_117, %c136_118] : memref<1x1x8x768xbf16, #tpu.memory_space<vmem>>, vector<1x1x8x256xbf16>
    %110 = vector.shape_cast %109 : vector<1x1x8x256xbf16> to vector<8x256xbf16>
    %c0_119 = arith.constant 0 : index
    %c168 = arith.constant 168 : index
    %c0_120 = arith.constant 0 : index
    %111 = vector.load %arg9[%c0_119, %c168, %c0_120] : memref<2x216x256xbf16, #tpu.memory_space<vmem>>, vector<1x8x256xbf16>
    %112 = vector.shape_cast %111 : vector<1x8x256xbf16> to vector<8x256xbf16>
    %113 = vector.shape_cast %110 : vector<8x256xbf16> to vector<1x8x256xbf16>
    tpu.vector_store %arg9[%c0_119, %c168, %c0_120], %113 {strides = array<i32>} : memref<2x216x256xbf16, #tpu.memory_space<vmem>>, vector<1x8x256xbf16>,
    %c0_121 = arith.constant 0 : index
    %c0_122 = arith.constant 0 : index
    %c0_123 = arith.constant 0 : index
    %c137 = arith.constant 137 : index
    %114 = vector.load %arg5[%c0_121, %c0_122, %c0_123, %c137] : memref<1x1x8x768xbf16, #tpu.memory_space<vmem>>, vector<1x1x8x256xbf16>
    %115 = vector.shape_cast %114 : vector<1x1x8x256xbf16> to vector<8x256xbf16>
    %c0_124 = arith.constant 0 : index
    %c176 = arith.constant 176 : index
    %c0_125 = arith.constant 0 : index
    %116 = vector.load %arg9[%c0_124, %c176, %c0_125] : memref<2x216x256xbf16, #tpu.memory_space<vmem>>, vector<1x8x256xbf16>
    %117 = vector.shape_cast %116 : vector<1x8x256xbf16> to vector<8x256xbf16>
    %118 = vector.shape_cast %115 : vector<8x256xbf16> to vector<1x8x256xbf16>
    tpu.vector_store %arg9[%c0_124, %c176, %c0_125], %118 {strides = array<i32>} : memref<2x216x256xbf16, #tpu.memory_space<vmem>>, vector<1x8x256xbf16>,
    %c0_126 = arith.constant 0 : index
    %c0_127 = arith.constant 0 : index
    %c0_128 = arith.constant 0 : index
    %c138 = arith.constant 138 : index
    %119 = vector.load %arg5[%c0_126, %c0_127, %c0_128, %c138] : memref<1x1x8x768xbf16, #tpu.memory_space<vmem>>, vector<1x1x8x256xbf16>
    %120 = vector.shape_cast %119 : vector<1x1x8x256xbf16> to vector<8x256xbf16>
    %c0_129 = arith.constant 0 : index
    %c184 = arith.constant 184 : index
    %c0_130 = arith.constant 0 : index
    %121 = vector.load %arg9[%c0_129, %c184, %c0_130] : memref<2x216x256xbf16, #tpu.memory_space<vmem>>, vector<1x8x256xbf16>
    %122 = vector.shape_cast %121 : vector<1x8x256xbf16> to vector<8x256xbf16>
    %123 = vector.shape_cast %120 : vector<8x256xbf16> to vector<1x8x256xbf16>
    tpu.vector_store %arg9[%c0_129, %c184, %c0_130], %123 {strides = array<i32>} : memref<2x216x256xbf16, #tpu.memory_space<vmem>>, vector<1x8x256xbf16>,
    %c0_131 = arith.constant 0 : index
    %c0_132 = arith.constant 0 : index
    %c0_133 = arith.constant 0 : index
    %c144_134 = arith.constant 144 : index
    %124 = vector.load %arg5[%c0_131, %c0_132, %c0_133, %c144_134] : memref<1x1x8x768xbf16, #tpu.memory_space<vmem>>, vector<1x1x8x256xbf16>
    %125 = vector.shape_cast %124 : vector<1x1x8x256xbf16> to vector<8x256xbf16>
    %c0_135 = arith.constant 0 : index
    %c192 = arith.constant 192 : index
    %c0_136 = arith.constant 0 : index
    %126 = vector.load %arg9[%c0_135, %c192, %c0_136] : memref<2x216x256xbf16, #tpu.memory_space<vmem>>, vector<1x8x256xbf16>
    %127 = vector.shape_cast %126 : vector<1x8x256xbf16> to vector<8x256xbf16>
    %128 = vector.shape_cast %125 : vector<8x256xbf16> to vector<1x8x256xbf16>
    tpu.vector_store %arg9[%c0_135, %c192, %c0_136], %128 {strides = array<i32>} : memref<2x216x256xbf16, #tpu.memory_space<vmem>>, vector<1x8x256xbf16>,
    %c0_137 = arith.constant 0 : index
    %c0_138 = arith.constant 0 : index
    %c0_139 = arith.constant 0 : index
    %c145 = arith.constant 145 : index
    %129 = vector.load %arg5[%c0_137, %c0_138, %c0_139, %c145] : memref<1x1x8x768xbf16, #tpu.memory_space<vmem>>, vector<1x1x8x256xbf16>
    %130 = vector.shape_cast %129 : vector<1x1x8x256xbf16> to vector<8x256xbf16>
    %c0_140 = arith.constant 0 : index
    %c200 = arith.constant 200 : index
    %c0_141 = arith.constant 0 : index
    %131 = vector.load %arg9[%c0_140, %c200, %c0_141] : memref<2x216x256xbf16, #tpu.memory_space<vmem>>, vector<1x8x256xbf16>
    %132 = vector.shape_cast %131 : vector<1x8x256xbf16> to vector<8x256xbf16>
    %133 = vector.shape_cast %130 : vector<8x256xbf16> to vector<1x8x256xbf16>
    tpu.vector_store %arg9[%c0_140, %c200, %c0_141], %133 {strides = array<i32>} : memref<2x216x256xbf16, #tpu.memory_space<vmem>>, vector<1x8x256xbf16>,
    %c0_142 = arith.constant 0 : index
    %c0_143 = arith.constant 0 : index
    %c0_144 = arith.constant 0 : index
    %c146 = arith.constant 146 : index
    %134 = vector.load %arg5[%c0_142, %c0_143, %c0_144, %c146] : memref<1x1x8x768xbf16, #tpu.memory_space<vmem>>, vector<1x1x8x256xbf16>
    %135 = vector.shape_cast %134 : vector<1x1x8x256xbf16> to vector<8x256xbf16>
    %c0_145 = arith.constant 0 : index
    %c208 = arith.constant 208 : index
    %c0_146 = arith.constant 0 : index
    %136 = vector.load %arg9[%c0_145, %c208, %c0_146] : memref<2x216x256xbf16, #tpu.memory_space<vmem>>, vector<1x8x256xbf16>
    %137 = vector.shape_cast %136 : vector<1x8x256xbf16> to vector<8x256xbf16>
    %138 = vector.shape_cast %135 : vector<8x256xbf16> to vector<1x8x256xbf16>
    tpu.vector_store %arg9[%c0_145, %c208, %c0_146], %138 {strides = array<i32>} : memref<2x216x256xbf16, #tpu.memory_space<vmem>>, vector<1x8x256xbf16>,
    %c0_147 = arith.constant 0 : index
    %c0_148 = arith.constant 0 : index
    %c0_149 = arith.constant 0 : index
    %c256 = arith.constant 256 : index
    %139 = vector.load %arg5[%c0_147, %c0_148, %c0_149, %c256] : memref<1x1x8x768xbf16, #tpu.memory_space<vmem>>, vector<1x1x8x256xbf16>
    %140 = vector.shape_cast %139 : vector<1x1x8x256xbf16> to vector<8x256xbf16>
    %c1_150 = arith.constant 1 : index
    %c0_151 = arith.constant 0 : index
    %c0_152 = arith.constant 0 : index
    %141 = vector.load %arg9[%c1_150, %c0_151, %c0_152] : memref<2x216x256xbf16, #tpu.memory_space<vmem>>, vector<1x8x256xbf16>
    %142 = vector.shape_cast %141 : vector<1x8x256xbf16> to vector<8x256xbf16>
    %143 = vector.shape_cast %140 : vector<8x256xbf16> to vector<1x8x256xbf16>
    tpu.vector_store %arg9[%c1_150, %c0_151, %c0_152], %143 {strides = array<i32>} : memref<2x216x256xbf16, #tpu.memory_space<vmem>>, vector<1x8x256xbf16>,
    %c0_153 = arith.constant 0 : index
    %c0_154 = arith.constant 0 : index
    %c0_155 = arith.constant 0 : index
    %c257 = arith.constant 257 : index
    %144 = vector.load %arg5[%c0_153, %c0_154, %c0_155, %c257] : memref<1x1x8x768xbf16, #tpu.memory_space<vmem>>, vector<1x1x8x256xbf16>
    %145 = vector.shape_cast %144 : vector<1x1x8x256xbf16> to vector<8x256xbf16>
    %c1_156 = arith.constant 1 : index
    %c8_157 = arith.constant 8 : index
    %c0_158 = arith.constant 0 : index
    %146 = vector.load %arg9[%c1_156, %c8_157, %c0_158] : memref<2x216x256xbf16, #tpu.memory_space<vmem>>, vector<1x8x256xbf16>
    %147 = vector.shape_cast %146 : vector<1x8x256xbf16> to vector<8x256xbf16>
    %148 = vector.shape_cast %145 : vector<8x256xbf16> to vector<1x8x256xbf16>
    tpu.vector_store %arg9[%c1_156, %c8_157, %c0_158], %148 {strides = array<i32>} : memref<2x216x256xbf16, #tpu.memory_space<vmem>>, vector<1x8x256xbf16>,
    %c0_159 = arith.constant 0 : index
    %c0_160 = arith.constant 0 : index
    %c0_161 = arith.constant 0 : index
    %c258 = arith.constant 258 : index
    %149 = vector.load %arg5[%c0_159, %c0_160, %c0_161, %c258] : memref<1x1x8x768xbf16, #tpu.memory_space<vmem>>, vector<1x1x8x256xbf16>
    %150 = vector.shape_cast %149 : vector<1x1x8x256xbf16> to vector<8x256xbf16>
    %c1_162 = arith.constant 1 : index
    %c16_163 = arith.constant 16 : index
    %c0_164 = arith.constant 0 : index
    %151 = vector.load %arg9[%c1_162, %c16_163, %c0_164] : memref<2x216x256xbf16, #tpu.memory_space<vmem>>, vector<1x8x256xbf16>
    %152 = vector.shape_cast %151 : vector<1x8x256xbf16> to vector<8x256xbf16>
    %153 = vector.shape_cast %150 : vector<8x256xbf16> to vector<1x8x256xbf16>
    tpu.vector_store %arg9[%c1_162, %c16_163, %c0_164], %153 {strides = array<i32>} : memref<2x216x256xbf16, #tpu.memory_space<vmem>>, vector<1x8x256xbf16>,
    %c0_165 = arith.constant 0 : index
    %c0_166 = arith.constant 0 : index
    %c0_167 = arith.constant 0 : index
    %c264 = arith.constant 264 : index
    %154 = vector.load %arg5[%c0_165, %c0_166, %c0_167, %c264] : memref<1x1x8x768xbf16, #tpu.memory_space<vmem>>, vector<1x1x8x256xbf16>
    %155 = vector.shape_cast %154 : vector<1x1x8x256xbf16> to vector<8x256xbf16>
    %c1_168 = arith.constant 1 : index
    %c24_169 = arith.constant 24 : index
    %c0_170 = arith.constant 0 : index
    %156 = vector.load %arg9[%c1_168, %c24_169, %c0_170] : memref<2x216x256xbf16, #tpu.memory_space<vmem>>, vector<1x8x256xbf16>
    %157 = vector.shape_cast %156 : vector<1x8x256xbf16> to vector<8x256xbf16>
    %158 = vector.shape_cast %155 : vector<8x256xbf16> to vector<1x8x256xbf16>
    tpu.vector_store %arg9[%c1_168, %c24_169, %c0_170], %158 {strides = array<i32>} : memref<2x216x256xbf16, #tpu.memory_space<vmem>>, vector<1x8x256xbf16>,
    %c0_171 = arith.constant 0 : index
    %c0_172 = arith.constant 0 : index
    %c0_173 = arith.constant 0 : index
    %c265 = arith.constant 265 : index
    %159 = vector.load %arg5[%c0_171, %c0_172, %c0_173, %c265] : memref<1x1x8x768xbf16, #tpu.memory_space<vmem>>, vector<1x1x8x256xbf16>
    %160 = vector.shape_cast %159 : vector<1x1x8x256xbf16> to vector<8x256xbf16>
    %c1_174 = arith.constant 1 : index
    %c32_175 = arith.constant 32 : index
    %c0_176 = arith.constant 0 : index
    %161 = vector.load %arg9[%c1_174, %c32_175, %c0_176] : memref<2x216x256xbf16, #tpu.memory_space<vmem>>, vector<1x8x256xbf16>
    %162 = vector.shape_cast %161 : vector<1x8x256xbf16> to vector<8x256xbf16>
    %163 = vector.shape_cast %160 : vector<8x256xbf16> to vector<1x8x256xbf16>
    tpu.vector_store %arg9[%c1_174, %c32_175, %c0_176], %163 {strides = array<i32>} : memref<2x216x256xbf16, #tpu.memory_space<vmem>>, vector<1x8x256xbf16>,
    %c0_177 = arith.constant 0 : index
    %c0_178 = arith.constant 0 : index
    %c0_179 = arith.constant 0 : index
    %c266 = arith.constant 266 : index
    %164 = vector.load %arg5[%c0_177, %c0_178, %c0_179, %c266] : memref<1x1x8x768xbf16, #tpu.memory_space<vmem>>, vector<1x1x8x256xbf16>
    %165 = vector.shape_cast %164 : vector<1x1x8x256xbf16> to vector<8x256xbf16>
    %c1_180 = arith.constant 1 : index
    %c40_181 = arith.constant 40 : index
    %c0_182 = arith.constant 0 : index
    %166 = vector.load %arg9[%c1_180, %c40_181, %c0_182] : memref<2x216x256xbf16, #tpu.memory_space<vmem>>, vector<1x8x256xbf16>
    %167 = vector.shape_cast %166 : vector<1x8x256xbf16> to vector<8x256xbf16>
    %168 = vector.shape_cast %165 : vector<8x256xbf16> to vector<1x8x256xbf16>
    tpu.vector_store %arg9[%c1_180, %c40_181, %c0_182], %168 {strides = array<i32>} : memref<2x216x256xbf16, #tpu.memory_space<vmem>>, vector<1x8x256xbf16>,
    %c0_183 = arith.constant 0 : index
    %c0_184 = arith.constant 0 : index
    %c0_185 = arith.constant 0 : index
    %c272 = arith.constant 272 : index
    %169 = vector.load %arg5[%c0_183, %c0_184, %c0_185, %c272] : memref<1x1x8x768xbf16, #tpu.memory_space<vmem>>, vector<1x1x8x256xbf16>
    %170 = vector.shape_cast %169 : vector<1x1x8x256xbf16> to vector<8x256xbf16>
    %c1_186 = arith.constant 1 : index
    %c48_187 = arith.constant 48 : index
    %c0_188 = arith.constant 0 : index
    %171 = vector.load %arg9[%c1_186, %c48_187, %c0_188] : memref<2x216x256xbf16, #tpu.memory_space<vmem>>, vector<1x8x256xbf16>
    %172 = vector.shape_cast %171 : vector<1x8x256xbf16> to vector<8x256xbf16>
    %173 = vector.shape_cast %170 : vector<8x256xbf16> to vector<1x8x256xbf16>
    tpu.vector_store %arg9[%c1_186, %c48_187, %c0_188], %173 {strides = array<i32>} : memref<2x216x256xbf16, #tpu.memory_space<vmem>>, vector<1x8x256xbf16>,
    %c0_189 = arith.constant 0 : index
    %c0_190 = arith.constant 0 : index
    %c0_191 = arith.constant 0 : index
    %c273 = arith.constant 273 : index
    %174 = vector.load %arg5[%c0_189, %c0_190, %c0_191, %c273] : memref<1x1x8x768xbf16, #tpu.memory_space<vmem>>, vector<1x1x8x256xbf16>
    %175 = vector.shape_cast %174 : vector<1x1x8x256xbf16> to vector<8x256xbf16>
    %c1_192 = arith.constant 1 : index
    %c56_193 = arith.constant 56 : index
    %c0_194 = arith.constant 0 : index
    %176 = vector.load %arg9[%c1_192, %c56_193, %c0_194] : memref<2x216x256xbf16, #tpu.memory_space<vmem>>, vector<1x8x256xbf16>
    %177 = vector.shape_cast %176 : vector<1x8x256xbf16> to vector<8x256xbf16>
    %178 = vector.shape_cast %175 : vector<8x256xbf16> to vector<1x8x256xbf16>
    tpu.vector_store %arg9[%c1_192, %c56_193, %c0_194], %178 {strides = array<i32>} : memref<2x216x256xbf16, #tpu.memory_space<vmem>>, vector<1x8x256xbf16>,
    %c0_195 = arith.constant 0 : index
    %c0_196 = arith.constant 0 : index
    %c0_197 = arith.constant 0 : index
    %c274 = arith.constant 274 : index
    %179 = vector.load %arg5[%c0_195, %c0_196, %c0_197, %c274] : memref<1x1x8x768xbf16, #tpu.memory_space<vmem>>, vector<1x1x8x256xbf16>
    %180 = vector.shape_cast %179 : vector<1x1x8x256xbf16> to vector<8x256xbf16>
    %c1_198 = arith.constant 1 : index
    %c64_199 = arith.constant 64 : index
    %c0_200 = arith.constant 0 : index
    %181 = vector.load %arg9[%c1_198, %c64_199, %c0_200] : memref<2x216x256xbf16, #tpu.memory_space<vmem>>, vector<1x8x256xbf16>
    %182 = vector.shape_cast %181 : vector<1x8x256xbf16> to vector<8x256xbf16>
    %183 = vector.shape_cast %180 : vector<8x256xbf16> to vector<1x8x256xbf16>
    tpu.vector_store %arg9[%c1_198, %c64_199, %c0_200], %183 {strides = array<i32>} : memref<2x216x256xbf16, #tpu.memory_space<vmem>>, vector<1x8x256xbf16>,
    %c0_201 = arith.constant 0 : index
    %c0_202 = arith.constant 0 : index
    %c0_203 = arith.constant 0 : index
    %c320 = arith.constant 320 : index
    %184 = vector.load %arg5[%c0_201, %c0_202, %c0_203, %c320] : memref<1x1x8x768xbf16, #tpu.memory_space<vmem>>, vector<1x1x8x256xbf16>
    %185 = vector.shape_cast %184 : vector<1x1x8x256xbf16> to vector<8x256xbf16>
    %c1_204 = arith.constant 1 : index
    %c72_205 = arith.constant 72 : index
    %c0_206 = arith.constant 0 : index
    %186 = vector.load %arg9[%c1_204, %c72_205, %c0_206] : memref<2x216x256xbf16, #tpu.memory_space<vmem>>, vector<1x8x256xbf16>
    %187 = vector.shape_cast %186 : vector<1x8x256xbf16> to vector<8x256xbf16>
    %188 = vector.shape_cast %185 : vector<8x256xbf16> to vector<1x8x256xbf16>
    tpu.vector_store %arg9[%c1_204, %c72_205, %c0_206], %188 {strides = array<i32>} : memref<2x216x256xbf16, #tpu.memory_space<vmem>>, vector<1x8x256xbf16>,
    %c0_207 = arith.constant 0 : index
    %c0_208 = arith.constant 0 : index
    %c0_209 = arith.constant 0 : index
    %c321 = arith.constant 321 : index
    %189 = vector.load %arg5[%c0_207, %c0_208, %c0_209, %c321] : memref<1x1x8x768xbf16, #tpu.memory_space<vmem>>, vector<1x1x8x256xbf16>
    %190 = vector.shape_cast %189 : vector<1x1x8x256xbf16> to vector<8x256xbf16>
    %c1_210 = arith.constant 1 : index
    %c80_211 = arith.constant 80 : index
    %c0_212 = arith.constant 0 : index
    %191 = vector.load %arg9[%c1_210, %c80_211, %c0_212] : memref<2x216x256xbf16, #tpu.memory_space<vmem>>, vector<1x8x256xbf16>
    %192 = vector.shape_cast %191 : vector<1x8x256xbf16> to vector<8x256xbf16>
    %193 = vector.shape_cast %190 : vector<8x256xbf16> to vector<1x8x256xbf16>
    tpu.vector_store %arg9[%c1_210, %c80_211, %c0_212], %193 {strides = array<i32>} : memref<2x216x256xbf16, #tpu.memory_space<vmem>>, vector<1x8x256xbf16>,
    %c0_213 = arith.constant 0 : index
    %c0_214 = arith.constant 0 : index
    %c0_215 = arith.constant 0 : index
    %c322 = arith.constant 322 : index
    %194 = vector.load %arg5[%c0_213, %c0_214, %c0_215, %c322] : memref<1x1x8x768xbf16, #tpu.memory_space<vmem>>, vector<1x1x8x256xbf16>
    %195 = vector.shape_cast %194 : vector<1x1x8x256xbf16> to vector<8x256xbf16>
    %c1_216 = arith.constant 1 : index
    %c88_217 = arith.constant 88 : index
    %c0_218 = arith.constant 0 : index
    %196 = vector.load %arg9[%c1_216, %c88_217, %c0_218] : memref<2x216x256xbf16, #tpu.memory_space<vmem>>, vector<1x8x256xbf16>
    %197 = vector.shape_cast %196 : vector<1x8x256xbf16> to vector<8x256xbf16>
    %198 = vector.shape_cast %195 : vector<8x256xbf16> to vector<1x8x256xbf16>
    tpu.vector_store %arg9[%c1_216, %c88_217, %c0_218], %198 {strides = array<i32>} : memref<2x216x256xbf16, #tpu.memory_space<vmem>>, vector<1x8x256xbf16>,
    %c0_219 = arith.constant 0 : index
    %c0_220 = arith.constant 0 : index
    %c0_221 = arith.constant 0 : index
    %c328 = arith.constant 328 : index
    %199 = vector.load %arg5[%c0_219, %c0_220, %c0_221, %c328] : memref<1x1x8x768xbf16, #tpu.memory_space<vmem>>, vector<1x1x8x256xbf16>
    %200 = vector.shape_cast %199 : vector<1x1x8x256xbf16> to vector<8x256xbf16>
    %c1_222 = arith.constant 1 : index
    %c96_223 = arith.constant 96 : index
    %c0_224 = arith.constant 0 : index
    %201 = vector.load %arg9[%c1_222, %c96_223, %c0_224] : memref<2x216x256xbf16, #tpu.memory_space<vmem>>, vector<1x8x256xbf16>
    %202 = vector.shape_cast %201 : vector<1x8x256xbf16> to vector<8x256xbf16>
    %203 = vector.shape_cast %200 : vector<8x256xbf16> to vector<1x8x256xbf16>
    tpu.vector_store %arg9[%c1_222, %c96_223, %c0_224], %203 {strides = array<i32>} : memref<2x216x256xbf16, #tpu.memory_space<vmem>>, vector<1x8x256xbf16>,
    %c0_225 = arith.constant 0 : index
    %c0_226 = arith.constant 0 : index
    %c0_227 = arith.constant 0 : index
    %c329 = arith.constant 329 : index
    %204 = vector.load %arg5[%c0_225, %c0_226, %c0_227, %c329] : memref<1x1x8x768xbf16, #tpu.memory_space<vmem>>, vector<1x1x8x256xbf16>
    %205 = vector.shape_cast %204 : vector<1x1x8x256xbf16> to vector<8x256xbf16>
    %c1_228 = arith.constant 1 : index
    %c104_229 = arith.constant 104 : index
    %c0_230 = arith.constant 0 : index
    %206 = vector.load %arg9[%c1_228, %c104_229, %c0_230] : memref<2x216x256xbf16, #tpu.memory_space<vmem>>, vector<1x8x256xbf16>
    %207 = vector.shape_cast %206 : vector<1x8x256xbf16> to vector<8x256xbf16>
    %208 = vector.shape_cast %205 : vector<8x256xbf16> to vector<1x8x256xbf16>
    tpu.vector_store %arg9[%c1_228, %c104_229, %c0_230], %208 {strides = array<i32>} : memref<2x216x256xbf16, #tpu.memory_space<vmem>>, vector<1x8x256xbf16>,
    %c0_231 = arith.constant 0 : index
    %c0_232 = arith.constant 0 : index
    %c0_233 = arith.constant 0 : index
    %c330 = arith.constant 330 : index
    %209 = vector.load %arg5[%c0_231, %c0_232, %c0_233, %c330] : memref<1x1x8x768xbf16, #tpu.memory_space<vmem>>, vector<1x1x8x256xbf16>
    %210 = vector.shape_cast %209 : vector<1x1x8x256xbf16> to vector<8x256xbf16>
    %c1_234 = arith.constant 1 : index
    %c112_235 = arith.constant 112 : index
    %c0_236 = arith.constant 0 : index
    %211 = vector.load %arg9[%c1_234, %c112_235, %c0_236] : memref<2x216x256xbf16, #tpu.memory_space<vmem>>, vector<1x8x256xbf16>
    %212 = vector.shape_cast %211 : vector<1x8x256xbf16> to vector<8x256xbf16>
    %213 = vector.shape_cast %210 : vector<8x256xbf16> to vector<1x8x256xbf16>
    tpu.vector_store %arg9[%c1_234, %c112_235, %c0_236], %213 {strides = array<i32>} : memref<2x216x256xbf16, #tpu.memory_space<vmem>>, vector<1x8x256xbf16>,
    %c0_237 = arith.constant 0 : index
    %c0_238 = arith.constant 0 : index
    %c0_239 = arith.constant 0 : index
    %c336 = arith.constant 336 : index
    %214 = vector.load %arg5[%c0_237, %c0_238, %c0_239, %c336] : memref<1x1x8x768xbf16, #tpu.memory_space<vmem>>, vector<1x1x8x256xbf16>
    %215 = vector.shape_cast %214 : vector<1x1x8x256xbf16> to vector<8x256xbf16>
    %c1_240 = arith.constant 1 : index
    %c120_241 = arith.constant 120 : index
    %c0_242 = arith.constant 0 : index
    %216 = vector.load %arg9[%c1_240, %c120_241, %c0_242] : memref<2x216x256xbf16, #tpu.memory_space<vmem>>, vector<1x8x256xbf16>
    %217 = vector.shape_cast %216 : vector<1x8x256xbf16> to vector<8x256xbf16>
    %218 = vector.shape_cast %215 : vector<8x256xbf16> to vector<1x8x256xbf16>
    tpu.vector_store %arg9[%c1_240, %c120_241, %c0_242], %218 {strides = array<i32>} : memref<2x216x256xbf16, #tpu.memory_space<vmem>>, vector<1x8x256xbf16>,
    %c0_243 = arith.constant 0 : index
    %c0_244 = arith.constant 0 : index
    %c0_245 = arith.constant 0 : index
    %c337 = arith.constant 337 : index
    %219 = vector.load %arg5[%c0_243, %c0_244, %c0_245, %c337] : memref<1x1x8x768xbf16, #tpu.memory_space<vmem>>, vector<1x1x8x256xbf16>
    %220 = vector.shape_cast %219 : vector<1x1x8x256xbf16> to vector<8x256xbf16>
    %c1_246 = arith.constant 1 : index
    %c128_247 = arith.constant 128 : index
    %c0_248 = arith.constant 0 : index
    %221 = vector.load %arg9[%c1_246, %c128_247, %c0_248] : memref<2x216x256xbf16, #tpu.memory_space<vmem>>, vector<1x8x256xbf16>
    %222 = vector.shape_cast %221 : vector<1x8x256xbf16> to vector<8x256xbf16>
    %223 = vector.shape_cast %220 : vector<8x256xbf16> to vector<1x8x256xbf16>
    tpu.vector_store %arg9[%c1_246, %c128_247, %c0_248], %223 {strides = array<i32>} : memref<2x216x256xbf16, #tpu.memory_space<vmem>>, vector<1x8x256xbf16>,
    %c0_249 = arith.constant 0 : index
    %c0_250 = arith.constant 0 : index
    %c0_251 = arith.constant 0 : index
    %c338 = arith.constant 338 : index
    %224 = vector.load %arg5[%c0_249, %c0_250, %c0_251, %c338] : memref<1x1x8x768xbf16, #tpu.memory_space<vmem>>, vector<1x1x8x256xbf16>
    %225 = vector.shape_cast %224 : vector<1x1x8x256xbf16> to vector<8x256xbf16>
    %c1_252 = arith.constant 1 : index
    %c136_253 = arith.constant 136 : index
    %c0_254 = arith.constant 0 : index
    %226 = vector.load %arg9[%c1_252, %c136_253, %c0_254] : memref<2x216x256xbf16, #tpu.memory_space<vmem>>, vector<1x8x256xbf16>
    %227 = vector.shape_cast %226 : vector<1x8x256xbf16> to vector<8x256xbf16>
    %228 = vector.shape_cast %225 : vector<8x256xbf16> to vector<1x8x256xbf16>
    tpu.vector_store %arg9[%c1_252, %c136_253, %c0_254], %228 {strides = array<i32>} : memref<2x216x256xbf16, #tpu.memory_space<vmem>>, vector<1x8x256xbf16>,
    %c0_255 = arith.constant 0 : index
    %c0_256 = arith.constant 0 : index
    %c0_257 = arith.constant 0 : index
    %c384 = arith.constant 384 : index
    %229 = vector.load %arg5[%c0_255, %c0_256, %c0_257, %c384] : memref<1x1x8x768xbf16, #tpu.memory_space<vmem>>, vector<1x1x8x256xbf16>
    %230 = vector.shape_cast %229 : vector<1x1x8x256xbf16> to vector<8x256xbf16>
    %c1_258 = arith.constant 1 : index
    %c144_259 = arith.constant 144 : index
    %c0_260 = arith.constant 0 : index
    %231 = vector.load %arg9[%c1_258, %c144_259, %c0_260] : memref<2x216x256xbf16, #tpu.memory_space<vmem>>, vector<1x8x256xbf16>
    %232 = vector.shape_cast %231 : vector<1x8x256xbf16> to vector<8x256xbf16>
    %233 = vector.shape_cast %230 : vector<8x256xbf16> to vector<1x8x256xbf16>
    tpu.vector_store %arg9[%c1_258, %c144_259, %c0_260], %233 {strides = array<i32>} : memref<2x216x256xbf16, #tpu.memory_space<vmem>>, vector<1x8x256xbf16>,
    %c0_261 = arith.constant 0 : index
    %c0_262 = arith.constant 0 : index
    %c0_263 = arith.constant 0 : index
    %c385 = arith.constant 385 : index
    %234 = vector.load %arg5[%c0_261, %c0_262, %c0_263, %c385] : memref<1x1x8x768xbf16, #tpu.memory_space<vmem>>, vector<1x1x8x256xbf16>
    %235 = vector.shape_cast %234 : vector<1x1x8x256xbf16> to vector<8x256xbf16>
    %c1_264 = arith.constant 1 : index
    %c152_265 = arith.constant 152 : index
    %c0_266 = arith.constant 0 : index
    %236 = vector.load %arg9[%c1_264, %c152_265, %c0_266] : memref<2x216x256xbf16, #tpu.memory_space<vmem>>, vector<1x8x256xbf16>
    %237 = vector.shape_cast %236 : vector<1x8x256xbf16> to vector<8x256xbf16>
    %238 = vector.shape_cast %235 : vector<8x256xbf16> to vector<1x8x256xbf16>
    tpu.vector_store %arg9[%c1_264, %c152_265, %c0_266], %238 {strides = array<i32>} : memref<2x216x256xbf16, #tpu.memory_space<vmem>>, vector<1x8x256xbf16>,
    %c0_267 = arith.constant 0 : index
    %c0_268 = arith.constant 0 : index
    %c0_269 = arith.constant 0 : index
    %c386 = arith.constant 386 : index
    %239 = vector.load %arg5[%c0_267, %c0_268, %c0_269, %c386] : memref<1x1x8x768xbf16, #tpu.memory_space<vmem>>, vector<1x1x8x256xbf16>
    %240 = vector.shape_cast %239 : vector<1x1x8x256xbf16> to vector<8x256xbf16>
    %c1_270 = arith.constant 1 : index
    %c160_271 = arith.constant 160 : index
    %c0_272 = arith.constant 0 : index
    %241 = vector.load %arg9[%c1_270, %c160_271, %c0_272] : memref<2x216x256xbf16, #tpu.memory_space<vmem>>, vector<1x8x256xbf16>
    %242 = vector.shape_cast %241 : vector<1x8x256xbf16> to vector<8x256xbf16>
    %243 = vector.shape_cast %240 : vector<8x256xbf16> to vector<1x8x256xbf16>
    tpu.vector_store %arg9[%c1_270, %c160_271, %c0_272], %243 {strides = array<i32>} : memref<2x216x256xbf16, #tpu.memory_space<vmem>>, vector<1x8x256xbf16>,
    %c0_273 = arith.constant 0 : index
    %c0_274 = arith.constant 0 : index
    %c0_275 = arith.constant 0 : index
    %c392 = arith.constant 392 : index
    %244 = vector.load %arg5[%c0_273, %c0_274, %c0_275, %c392] : memref<1x1x8x768xbf16, #tpu.memory_space<vmem>>, vector<1x1x8x256xbf16>
    %245 = vector.shape_cast %244 : vector<1x1x8x256xbf16> to vector<8x256xbf16>
    %c1_276 = arith.constant 1 : index
    %c168_277 = arith.constant 168 : index
    %c0_278 = arith.constant 0 : index
    %246 = vector.load %arg9[%c1_276, %c168_277, %c0_278] : memref<2x216x256xbf16, #tpu.memory_space<vmem>>, vector<1x8x256xbf16>
    %247 = vector.shape_cast %246 : vector<1x8x256xbf16> to vector<8x256xbf16>
    %248 = vector.shape_cast %245 : vector<8x256xbf16> to vector<1x8x256xbf16>
    tpu.vector_store %arg9[%c1_276, %c168_277, %c0_278], %248 {strides = array<i32>} : memref<2x216x256xbf16, #tpu.memory_space<vmem>>, vector<1x8x256xbf16>,
    %c0_279 = arith.constant 0 : index
    %c0_280 = arith.constant 0 : index
    %c0_281 = arith.constant 0 : index
    %c393 = arith.constant 393 : index
    %249 = vector.load %arg5[%c0_279, %c0_280, %c0_281, %c393] : memref<1x1x8x768xbf16, #tpu.memory_space<vmem>>, vector<1x1x8x256xbf16>
    %250 = vector.shape_cast %249 : vector<1x1x8x256xbf16> to vector<8x256xbf16>
    %c1_282 = arith.constant 1 : index
    %c176_283 = arith.constant 176 : index
    %c0_284 = arith.constant 0 : index
    %251 = vector.load %arg9[%c1_282, %c176_283, %c0_284] : memref<2x216x256xbf16, #tpu.memory_space<vmem>>, vector<1x8x256xbf16>
    %252 = vector.shape_cast %251 : vector<1x8x256xbf16> to vector<8x256xbf16>
    %253 = vector.shape_cast %250 : vector<8x256xbf16> to vector<1x8x256xbf16>
    tpu.vector_store %arg9[%c1_282, %c176_283, %c0_284], %253 {strides = array<i32>} : memref<2x216x256xbf16, #tpu.memory_space<vmem>>, vector<1x8x256xbf16>,
    %c0_285 = arith.constant 0 : index
    %c0_286 = arith.constant 0 : index
    %c0_287 = arith.constant 0 : index
    %c394 = arith.constant 394 : index
    %254 = vector.load %arg5[%c0_285, %c0_286, %c0_287, %c394] : memref<1x1x8x768xbf16, #tpu.memory_space<vmem>>, vector<1x1x8x256xbf16>
    %255 = vector.shape_cast %254 : vector<1x1x8x256xbf16> to vector<8x256xbf16>
    %c1_288 = arith.constant 1 : index
    %c184_289 = arith.constant 184 : index
    %c0_290 = arith.constant 0 : index
    %256 = vector.load %arg9[%c1_288, %c184_289, %c0_290] : memref<2x216x256xbf16, #tpu.memory_space<vmem>>, vector<1x8x256xbf16>
    %257 = vector.shape_cast %256 : vector<1x8x256xbf16> to vector<8x256xbf16>
    %258 = vector.shape_cast %255 : vector<8x256xbf16> to vector<1x8x256xbf16>
    tpu.vector_store %arg9[%c1_288, %c184_289, %c0_290], %258 {strides = array<i32>} : memref<2x216x256xbf16, #tpu.memory_space<vmem>>, vector<1x8x256xbf16>,
    %c0_291 = arith.constant 0 : index
    %c0_292 = arith.constant 0 : index
    %c0_293 = arith.constant 0 : index
    %c400 = arith.constant 400 : index
    %259 = vector.load %arg5[%c0_291, %c0_292, %c0_293, %c400] : memref<1x1x8x768xbf16, #tpu.memory_space<vmem>>, vector<1x1x8x256xbf16>
    %260 = vector.shape_cast %259 : vector<1x1x8x256xbf16> to vector<8x256xbf16>
    %c1_294 = arith.constant 1 : index
    %c192_295 = arith.constant 192 : index
    %c0_296 = arith.constant 0 : index
    %261 = vector.load %arg9[%c1_294, %c192_295, %c0_296] : memref<2x216x256xbf16, #tpu.memory_space<vmem>>, vector<1x8x256xbf16>
    %262 = vector.shape_cast %261 : vector<1x8x256xbf16> to vector<8x256xbf16>
    %263 = vector.shape_cast %260 : vector<8x256xbf16> to vector<1x8x256xbf16>
    tpu.vector_store %arg9[%c1_294, %c192_295, %c0_296], %263 {strides = array<i32>} : memref<2x216x256xbf16, #tpu.memory_space<vmem>>, vector<1x8x256xbf16>,
    %c0_297 = arith.constant 0 : index
    %c0_298 = arith.constant 0 : index
    %c0_299 = arith.constant 0 : index
    %c401 = arith.constant 401 : index
    %264 = vector.load %arg5[%c0_297, %c0_298, %c0_299, %c401] : memref<1x1x8x768xbf16, #tpu.memory_space<vmem>>, vector<1x1x8x256xbf16>
    %265 = vector.shape_cast %264 : vector<1x1x8x256xbf16> to vector<8x256xbf16>
    %c1_300 = arith.constant 1 : index
    %c200_301 = arith.constant 200 : index
    %c0_302 = arith.constant 0 : index
    %266 = vector.load %arg9[%c1_300, %c200_301, %c0_302] : memref<2x216x256xbf16, #tpu.memory_space<vmem>>, vector<1x8x256xbf16>
    %267 = vector.shape_cast %266 : vector<1x8x256xbf16> to vector<8x256xbf16>
    %268 = vector.shape_cast %265 : vector<8x256xbf16> to vector<1x8x256xbf16>
    tpu.vector_store %arg9[%c1_300, %c200_301, %c0_302], %268 {strides = array<i32>} : memref<2x216x256xbf16, #tpu.memory_space<vmem>>, vector<1x8x256xbf16>,
    %c0_303 = arith.constant 0 : index
    %c0_304 = arith.constant 0 : index
    %c0_305 = arith.constant 0 : index
    %c402 = arith.constant 402 : index
    %269 = vector.load %arg5[%c0_303, %c0_304, %c0_305, %c402] : memref<1x1x8x768xbf16, #tpu.memory_space<vmem>>, vector<1x1x8x256xbf16>
    %270 = vector.shape_cast %269 : vector<1x1x8x256xbf16> to vector<8x256xbf16>
    %c1_306 = arith.constant 1 : index
    %c208_307 = arith.constant 208 : index
    %c0_308 = arith.constant 0 : index
    %271 = vector.load %arg9[%c1_306, %c208_307, %c0_308] : memref<2x216x256xbf16, #tpu.memory_space<vmem>>, vector<1x8x256xbf16>
    %272 = vector.shape_cast %271 : vector<1x8x256xbf16> to vector<8x256xbf16>
    %273 = vector.shape_cast %270 : vector<8x256xbf16> to vector<1x8x256xbf16>
    tpu.vector_store %arg9[%c1_306, %c208_307, %c0_308], %273 {strides = array<i32>} : memref<2x216x256xbf16, #tpu.memory_space<vmem>>, vector<1x8x256xbf16>,
    %c0_309 = arith.constant 0 : index
    %c0_310 = arith.constant 0 : index
    %274 = vector.load %arg8[%c0_309, %c0_310] : memref<8x216xbf16, #tpu.memory_space<vmem>>, vector<8x216xbf16>
    %c0_311 = arith.constant 0 : index
    %c0_312 = arith.constant 0 : index
    %c0_313 = arith.constant 0 : index
    %275 = vector.load %arg9[%c0_311, %c0_312, %c0_313] : memref<2x216x256xbf16, #tpu.memory_space<vmem>>, vector<1x216x256xbf16>
    %276 = vector.shape_cast %275 : vector<1x216x256xbf16> to vector<216x256xbf16>
    %cst = arith.constant dense<0.000000e+00> : vector<8x256xf32>
    %277 = tpu.matmul %274, %276, %cst {dimension_numbers = #tpu.dot_dimension_numbers<[1], [0], [0], [1], [0, 0, 1, 1], [], []>} : vector<8x216xbf16>, vector<216x256xbf16>, vector<8x256xf32> -> vector<8x256xf32>
    %278 = vector.broadcast %3 : vector<8x1xf32> to vector<8x256xf32>
    %279 = arith.addf %277, %278 : vector<8x256xf32>
    %280 = arith.truncf %279 : vector<8x256xf32> to vector<8x256xbf16>
    %c0_314 = arith.constant 0 : index
    %c0_315 = arith.constant 0 : index
    %c0_316 = arith.constant 0 : index
    %281 = vector.load %arg7[%c0_314, %c0_315, %c0_316] : memref<1x8x512xbf16, #tpu.memory_space<vmem>>, vector<1x8x256xbf16>
    %282 = vector.shape_cast %281 : vector<1x8x256xbf16> to vector<8x256xbf16>
    %283 = vector.shape_cast %280 : vector<8x256xbf16> to vector<1x8x256xbf16>
    tpu.vector_store %arg7[%c0_314, %c0_315, %c0_316], %283 {strides = array<i32>} : memref<1x8x512xbf16, #tpu.memory_space<vmem>>, vector<1x8x256xbf16>,
    %c0_317 = arith.constant 0 : index
    %c0_318 = arith.constant 0 : index
    %284 = vector.load %arg8[%c0_317, %c0_318] : memref<8x216xbf16, #tpu.memory_space<vmem>>, vector<8x216xbf16>
    %c1_319 = arith.constant 1 : index
    %c0_320 = arith.constant 0 : index
    %c0_321 = arith.constant 0 : index
    %285 = vector.load %arg9[%c1_319, %c0_320, %c0_321] : memref<2x216x256xbf16, #tpu.memory_space<vmem>>, vector<1x216x256xbf16>
    %286 = vector.shape_cast %285 : vector<1x216x256xbf16> to vector<216x256xbf16>
    %cst_322 = arith.constant dense<0.000000e+00> : vector<8x256xf32>
    %287 = tpu.matmul %284, %286, %cst_322 {dimension_numbers = #tpu.dot_dimension_numbers<[1], [0], [0], [1], [0, 0, 1, 1], [], []>} : vector<8x216xbf16>, vector<216x256xbf16>, vector<8x256xf32> -> vector<8x256xf32>
    %288 = vector.broadcast %3 : vector<8x1xf32> to vector<8x256xf32>
    %289 = arith.addf %287, %288 : vector<8x256xf32>
    %290 = arith.truncf %289 : vector<8x256xf32> to vector<8x256xbf16>
    %c0_323 = arith.constant 0 : index
    %c0_324 = arith.constant 0 : index
    %c256_325 = arith.constant 256 : index
    %291 = vector.load %arg7[%c0_323, %c0_324, %c256_325] : memref<1x8x512xbf16, #tpu.memory_space<vmem>>, vector<1x8x256xbf16>
    %292 = vector.shape_cast %291 : vector<1x8x256xbf16> to vector<8x256xbf16>
    %293 = vector.shape_cast %290 : vector<8x256xbf16> to vector<1x8x256xbf16>
    tpu.vector_store %arg7[%c0_323, %c0_324, %c256_325], %293 {strides = array<i32>} : memref<1x8x512xbf16, #tpu.memory_space<vmem>>, vector<1x8x256xbf16>,
    return
  }
  func.func @transform_0(%arg0: i32, %arg1: i32, %arg2: i32) -> (i32, i32) {
    %c0_i32 = arith.constant 0 : i32
    %c0_i32_0 = arith.constant 0 : i32
    return %arg1, %c0_i32 : i32, i32
  }
  func.func @transform_1(%arg0: i32, %arg1: i32, %arg2: i32) -> (i32, i32, i32) {
    %c0_i32 = arith.constant 0 : i32
    %c0_i32_0 = arith.constant 0 : i32
    %c0_i32_1 = arith.constant 0 : i32
    return %arg0, %c0_i32, %c0_i32_0 : i32, i32, i32
  }
  func.func @transform_2(%arg0: i32, %arg1: i32, %arg2: i32) -> (i32, i32, i32, i32) {
    %c0_i32 = arith.constant 0 : i32
    %c0_i32_0 = arith.constant 0 : i32
    %c0_i32_1 = arith.constant 0 : i32
    return %arg0, %arg2, %c0_i32, %c0_i32_0 : i32, i32, i32, i32
  }
  func.func @transform_3(%arg0: i32, %arg1: i32, %arg2: i32) -> (i32, i32) {
    %c0_i32 = arith.constant 0 : i32
    %c0_i32_0 = arith.constant 0 : i32
    return %arg1, %c0_i32 : i32, i32
  }
  func.func @transform_4(%arg0: i32, %arg1: i32, %arg2: i32) -> (i32, i32, i32) {
    %c0_i32 = arith.constant 0 : i32
    return %arg0, %arg1, %arg2 : i32, i32, i32
  }
}

</mosaic_0001>

<llo_original>
// kernel: tpu_custom_call.1
$region0: #{tpu_custom_call.1}
  #allocation0 [shape = 'u32[]', space=smem, size = 0x4, offset = 0x4, fixed_abs, tag = 'smem constant byte address 0x4 - core index']
  #allocation1 [shape = 'u32[72,128]{1,0:T(1,128)}', space=vmem, size = 0x9000, scoped, tag = 'internal scratch']
  #allocation2 [shape = 'bf16[8,216]{1,0:T(8,128)(2,1)}', space=vmem, size = 0x1000, scoped, tag = 'scratch operand']
  #allocation3 [shape = 'bf16[2,216,256]{2,1,0:T(8,128)(2,1)}', space=vmem, size = 0x36000, scoped, tag = 'scratch operand']
  %s0 = inlined_call_operand.hbm [shape: f32[8,216], index: 0, kind: input, shape index: {}]
  %s1 = inlined_call_operand.vmem [shape: f32[2,1,216], index: 1, kind: input, shape index: {}]
  %s2 = inlined_call_operand.hbm [shape: bf16[2,1,8,768], index: 2, kind: input, shape index: {}]
  %s3 = inlined_call_operand.vmem [shape: f32[8,1], index: 3, kind: input, shape index: {}]
  %s4 = inlined_call_operand.hbm [shape: bf16[2,8,512], index: 4, kind: output, shape index: {}]
  %s5 = sld [smem:[#allocation0]]
  $region61: #{tpu_custom_call.1} parent=0
    _
  %s7 = ssub.s32 1, %s5
  %s8 = scalar_select 0, %s7, %s5
  $region1: #{tpu_custom_call.1} parent=0
    #allocation4 [shape = 'u8[8192]{0}', space=vmem, size = 0x2000, scoped, tag = 'input window, operand 0, single buffered']
    #allocation5 [shape = 's32[2]{0}', space=sflag, size = 0x8, scoped, tag = 'scoped memory for tpu_custom_call.1']
    #allocation6 [shape = 's32[2]{0}', space=sflag, size = 0x8, scoped, tag = 'scoped memory for tpu_custom_call.1']
    #allocation7 [shape = 'u8[24576]{0}', space=vmem, size = 0x6000, scoped, tag = 'input window, operand 2']
    #allocation8 [shape = 's32[2]{0}', space=sflag, size = 0x8, scoped, tag = 'scoped memory for tpu_custom_call.1']
    #allocation9 [shape = 'u8[16384]{0}', space=vmem, size = 0x4000, scoped, tag = 'output window, operand 0']
    %9 = vsyncpa [#allocation5], 0
    %10 = vsyncpa [#allocation8], 0
    %s11 = scalar_lea.sflag [#allocation8], 1
    %12 = vsyncpa %s11, 0
    %13 = vsyncpa [#allocation6], 0
    %s14 = scalar_lea.sflag [#allocation6], 1
    %15 = vsyncpa %s14, 0
    loop: start=0, step=1, limit=4
    $region2: #{tpu_custom_call.1} parent=1 // loop_pre_header
      _
    $region3: #{tpu_custom_call.1} parent=1 // loop_header
      %s17 = sphi 0, %s21
      %p18 = scmp.ge.s32.totalorder %s17, 4
      %s24 = sphi 0, %s43
      %s25 = sphi 0, %s39
      %s26 = sphi 0, %s35
      %s27 = sphi 0, %s24
      %s28 = sphi 0, %s25
      %s29 = sphi 0, %s26
      %s30 = sphi 0, %s27
      %s31 = sphi 0, %s28
      %s32 = sphi 0, %s29
      %s46 = sphi 0, %s48
      %s49 = sphi 0, %s46
      %s50 = sphi 0, %s49
      %s66 = sphi 0, %s50
      %s72 = sphi 0, %s74
      %s75 = sphi 0, %s72
      %s76 = sphi 0, %s75
      %s92 = sphi 0, %s76
      %s100 = sphi 0, %s102
      %s103 = sphi 0, %s100
      %s104 = sphi 0, %s103
      %s120 = sphi 0, %s104
      %s126 = sphi 0, %s128
      %s129 = sphi 0, %s126
      %s130 = sphi 0, %s129
      %s146 = sphi 0, %s130
      %s156 = sphi 0, %s158
      %s159 = sphi 0, %s156
      %s160 = sphi 0, %s159
      %s176 = sphi 0, %s160
    $region4: #{tpu_custom_call.1} parent=1 // loop_header_branch
      %20 = sbr.rel (%p18) target = $region8
    $region5: #{tpu_custom_call.1} parent=1 // loop_body
      %s22 = ssub.s32 %s17, 1
      %s23 = ssub.s32 %s17, 2
      %s33 = sadd.s32 1, %s26
      %p34 = scmp.ge.s32.totalorder %s33, 1
      %s35 = scalar_select %p34, 0, %s33
      %s36 = sadd.s32 1, %s25
      %s37 = scalar_select %p34, %s36, %s25
      %p38 = scmp.ge.s32.totalorder %s37, 1
      %s39 = scalar_select %p38, 0, %s37
      %s40 = sadd.s32 1, %s24
      %s41 = scalar_select %p38, %s40, %s24
      %p42 = scmp.ge.s32.totalorder %s41, 2
      %s43 = scalar_select %p42, 0, %s41
      %s44 = ssub.s32 %s25, %s39
      %p45 = scmp.eq.s32.totalorder %s44, 0
      %s47 = sadd.s32 %s46, 1
      %s48 = scalar_select %p45, %s46, %s47
      %p51 = pneg %p45
      %p52 = scmp.eq.s32.totalorder %s17, 1
      %p53 = por %p51, %p52
      %p54 = scmp.ne.s32.totalorder %s46, %s49
      %p55 = scmp.eq.s32.totalorder %s17, 0
      %p56 = por %p54, %p55
      %p57 = scmp.ne.s32.totalorder %s46, %s49
      %p58 = scmp.eq.s32.totalorder %s22, 1
      %p59 = por %p57, %p58
      %p60 = scmp.ne.s32.totalorder %s49, %s50
      %p61 = scmp.eq.s32.totalorder %s22, 0
      %p62 = por %p60, %p61
      %p63 = scmp.ne.s32.totalorder %s49, %s50
      %p64 = scmp.eq.s32.totalorder %s23, 1
      %p65 = por %p63, %p64
      %p67 = scmp.ne.s32.totalorder %s50, %s66
      %p68 = scmp.eq.s32.totalorder %s23, 0
      %p69 = por %p67, %p68
      %s70 = ssub.s32 %s24, %s43
      %p71 = scmp.eq.s32.totalorder %s70, 0
      %s73 = sadd.s32 %s72, 1
      %s74 = scalar_select %p71, %s72, %s73
      %p77 = pneg %p71
      %p78 = scmp.eq.s32.totalorder %s17, 1
      %p79 = por %p77, %p78
      %p80 = scmp.ne.s32.totalorder %s72, %s75
      %p81 = scmp.eq.s32.totalorder %s17, 0
      %p82 = por %p80, %p81
      %p83 = scmp.ne.s32.totalorder %s72, %s75
      %p84 = scmp.eq.s32.totalorder %s22, 1
      %p85 = por %p83, %p84
      %p86 = scmp.ne.s32.totalorder %s75, %s76
      %p87 = scmp.eq.s32.totalorder %s22, 0
      %p88 = por %p86, %p87
      %p89 = scmp.ne.s32.totalorder %s75, %s76
      %p90 = scmp.eq.s32.totalorder %s23, 1
      %p91 = por %p89, %p90
      %p93 = scmp.ne.s32.totalorder %s76, %s92
      %p94 = scmp.eq.s32.totalorder %s23, 0
      %p95 = por %p93, %p94
      %s96 = ssub.s32 %s24, %s43
      %s97 = ssub.s32 %s26, %s35
      %s98 = sor.u32 %s96, %s97
      %p99 = scmp.eq.s32.totalorder %s98, 0
      %s101 = sadd.s32 %s100, 1
      %s102 = scalar_select %p99, %s100, %s101
      %p105 = pneg %p99
      %p106 = scmp.eq.s32.totalorder %s17, 1
      %p107 = por %p105, %p106
      %p108 = scmp.ne.s32.totalorder %s100, %s103
      %p109 = scmp.eq.s32.totalorder %s17, 0
      %p110 = por %p108, %p109
      %p111 = scmp.ne.s32.totalorder %s100, %s103
      %p112 = scmp.eq.s32.totalorder %s22, 1
      %p113 = por %p111, %p112
      %p114 = scmp.ne.s32.totalorder %s103, %s104
      %p115 = scmp.eq.s32.totalorder %s22, 0
      %p116 = por %p114, %p115
      %p117 = scmp.ne.s32.totalorder %s103, %s104
      %p118 = scmp.eq.s32.totalorder %s23, 1
      %p119 = por %p117, %p118
      %p121 = scmp.ne.s32.totalorder %s104, %s120
      %p122 = scmp.eq.s32.totalorder %s23, 0
      %p123 = por %p121, %p122
      %s124 = ssub.s32 %s25, %s39
      %p125 = scmp.eq.s32.totalorder %s124, 0
      %s127 = sadd.s32 %s126, 1
      %s128 = scalar_select %p125, %s126, %s127
      %p131 = pneg %p125
      %p132 = scmp.eq.s32.totalorder %s17, 1
      %p133 = por %p131, %p132
      %p134 = scmp.ne.s32.totalorder %s126, %s129
      %p135 = scmp.eq.s32.totalorder %s17, 0
      %p136 = por %p134, %p135
      %p137 = scmp.ne.s32.totalorder %s126, %s129
      %p138 = scmp.eq.s32.totalorder %s22, 1
      %p139 = por %p137, %p138
      %p140 = scmp.ne.s32.totalorder %s129, %s130
      %p141 = scmp.eq.s32.totalorder %s22, 0
      %p142 = por %p140, %p141
      %p143 = scmp.ne.s32.totalorder %s129, %s130
      %p144 = scmp.eq.s32.totalorder %s23, 1
      %p145 = por %p143, %p144
      %p147 = scmp.ne.s32.totalorder %s130, %s146
      %p148 = scmp.eq.s32.totalorder %s23, 0
      %p149 = por %p147, %p148
      %s150 = ssub.s32 %s24, %s43
      %s151 = ssub.s32 %s25, %s39
      %s152 = sor.u32 %s150, %s151
      %s153 = ssub.s32 %s26, %s35
      %s154 = sor.u32 %s152, %s153
      %p155 = scmp.eq.s32.totalorder %s154, 0
      %s157 = sadd.s32 %s156, 1
      %s158 = scalar_select %p155, %s156, %s157
      %p161 = pneg %p155
      %p162 = scmp.eq.s32.totalorder %s17, 1
      %p163 = por %p161, %p162
      %p164 = scmp.ne.s32.totalorder %s156, %s159
      %p165 = scmp.eq.s32.totalorder %s17, 0
      %p166 = por %p164, %p165
      %p167 = scmp.ne.s32.totalorder %s156, %s159
      %p168 = scmp.eq.s32.totalorder %s22, 1
      %p169 = por %p167, %p168
      %p170 = scmp.ne.s32.totalorder %s159, %s160
      %p171 = scmp.eq.s32.totalorder %s22, 0
      %p172 = por %p170, %p171
      %p173 = scmp.ne.s32.totalorder %s159, %s160
      %p174 = scmp.eq.s32.totalorder %s23, 1
      %p175 = por %p173, %p174
      %p177 = scmp.ne.s32.totalorder %s160, %s176
      %p178 = scmp.eq.s32.totalorder %s23, 0
      %p179 = por %p177, %p178
      %p180 = scmp.le.s32.totalorder 1, %s17
      %p181 = scmp.lt.s32.totalorder %s17, 3
      %p182 = pnand %p180, %p181
      %p183 = pneg %p182
      // Predicated region
      $region9: #{tpu_custom_call.1} parent=5 // pred_check
        _
      $region10: #{tpu_custom_call.1} parent=5 // pred_check_branch
        %185 = sbr.rel (%p182) target = $region12
      $region11: #{tpu_custom_call.1} parent=5 // pred_region
        %s186 = ssub.s32 %s17, 1
        // Predicated region
        $region13: #{tpu_custom_call.1} parent=11 // pred_check
          %p187 = pneg %p62
        $region14: #{tpu_custom_call.1} parent=11 // pred_check_branch
          %189 = sbr.rel (%p187) target = $region16
        $region15: #{tpu_custom_call.1} parent=11 // pred_region
          %191 = vsyncadd [#allocation5], 0
          %s192 = smul.addr %s28, 2
          %s193 = smul.addr %s192, 8
          %s194 = scalar_lea.hbm %s0, %s193
          %s196 = sshll.u32 %s194, 4
          %s197 = int_to_ptr.hbm [resolvable:$true] %s196
          %s198 = sshll.u32 [#allocation4], 4
          %s199 = int_to_ptr.vmem [resolvable:$true] %s198
          %201 = dma.hbm_to_vmem [thread:$0]  %s197, 256, %s199, [#allocation5]
        $region16: #{tpu_custom_call.1} parent=11 // pred_fallthru
          _
        // Predicated region
        $region17: #{tpu_custom_call.1} parent=11 // pred_check
          %p202 = pneg %p142
        $region18: #{tpu_custom_call.1} parent=11 // pred_check_branch
          %204 = sbr.rel (%p202) target = $region20
        $region19: #{tpu_custom_call.1} parent=11 // pred_region
          %p205 = scmp.lt.s32.totalorder %s28, 0
          %s206 = scalar_select %p205, %s28, 0
          %s207 = smul.addr %s206, 8
          %s208 = scalar_lea.vmem %s3, %s207
        $region20: #{tpu_custom_call.1} parent=11 // pred_fallthru
          _
      $region12: #{tpu_custom_call.1} parent=5 // pred_fallthru
        _
      %p209 = scmp.lt.s32.totalorder %s17, 2
      // Predicated region
      $region21: #{tpu_custom_call.1} parent=5 // pred_check
        %p210 = pneg %p209
      $region22: #{tpu_custom_call.1} parent=5 // pred_check_branch
        %212 = sbr.rel (%p210) target = $region24
      $region23: #{tpu_custom_call.1} parent=5 // pred_region
        // Predicated region
        $region25: #{tpu_custom_call.1} parent=23 // pred_check
          %p213 = pneg %p82
        $region26: #{tpu_custom_call.1} parent=23 // pred_check_branch
          %215 = sbr.rel (%p213) target = $region28
        $region27: #{tpu_custom_call.1} parent=23 // pred_region
          %p216 = scmp.lt.s32.totalorder %s24, 1
          %s217 = scalar_select %p216, %s24, 1
          %s218 = smul.addr %s217, 2
          %s219 = scalar_lea.vmem %s1, %s218
        $region28: #{tpu_custom_call.1} parent=23 // pred_fallthru
          _
        // Predicated region
        $region29: #{tpu_custom_call.1} parent=23 // pred_check
          %p220 = pneg %p110
        $region30: #{tpu_custom_call.1} parent=23 // pred_check_branch
          %222 = sbr.rel (%p220) target = $region32
        $region31: #{tpu_custom_call.1} parent=23 // pred_region
          %s223 = sand.u32 %s100, 1
          %s224 = scalar_lea.sflag [#allocation8], %s223
          %s225 = sand.u32 %s100, 1
          %s226 = smul.addr %s225, 24
          %s227 = scalar_lea.vmem [#allocation7], %s226
          %229 = vsyncadd %s224, 0
          %s230 = smul.addr %s26, 6
          %s231 = smul.addr %s24, 6
          %s232 = sadd.s32 %s230, %s231
          %s233 = smul.addr %s232, 4
          %s234 = scalar_lea.hbm %s2, %s233
          %s236 = sshll.u32 %s234, 4
          %s237 = int_to_ptr.hbm [resolvable:$true] %s236
          %s238 = sshll.u32 %s227, 4
          %s239 = int_to_ptr.vmem [resolvable:$true] %s238
          %241 = dma.hbm_to_vmem [thread:$0]  %s237, 384, %s239, %s224
        $region32: #{tpu_custom_call.1} parent=23 // pred_fallthru
          _
      $region24: #{tpu_custom_call.1} parent=5 // pred_fallthru
        _
      %p242 = scmp.le.s32.totalorder 1, %s17
      %p243 = scmp.lt.s32.totalorder %s17, 3
      %p244 = pnand %p242, %p243
      %p245 = pneg %p244
      // Predicated region
      $region33: #{tpu_custom_call.1} parent=5 // pred_check
        _
      $region34: #{tpu_custom_call.1} parent=5 // pred_check_branch
        %247 = sbr.rel (%p244) target = $region36
      $region35: #{tpu_custom_call.1} parent=5 // pred_region
        %s248 = ssub.s32 %s17, 1
        // Predicated region
        $region37: #{tpu_custom_call.1} parent=35 // pred_check
          %p249 = pneg %p62
        $region38: #{tpu_custom_call.1} parent=35 // pred_check_branch
          %251 = sbr.rel (%p249) target = $region40
        $region39: #{tpu_custom_call.1} parent=35 // pred_region
          %253 = dma.done [#allocation5], 256
        $region40: #{tpu_custom_call.1} parent=35 // pred_fallthru
          _
        %s254 = sand.u32 %s103, 1
        %s255 = scalar_lea.sflag [#allocation8], %s254
        %s256 = sand.u32 %s103, 1
        %s257 = smul.addr %s256, 24
        %s258 = scalar_lea.vmem [#allocation7], %s257
        // Predicated region
        $region41: #{tpu_custom_call.1} parent=35 // pred_check
          %p259 = pneg %p116
        $region42: #{tpu_custom_call.1} parent=35 // pred_check_branch
          %261 = sbr.rel (%p259) target = $region44
        $region43: #{tpu_custom_call.1} parent=35 // pred_region
          %263 = dma.done %s255, 384
        $region44: #{tpu_custom_call.1} parent=35 // pred_fallthru
          _
        %p264 = pneg %p62
        %p265 = pneg %p59
        %p266 = scmp.lt.s32.totalorder %s27, 1
        %s267 = scalar_select %p266, %s27, 1
        %s268 = smul.addr %s267, 2
        %s269 = scalar_lea.vmem %s1, %s268
        %p270 = pneg %p88
        %p271 = pneg %p85
        %s272 = sand.u32 %s103, 1
        %s273 = scalar_lea.sflag [#allocation8], %s272
        %s274 = sand.u32 %s103, 1
        %s275 = smul.addr %s274, 24
        %s276 = scalar_lea.vmem [#allocation7], %s275
        %p277 = pneg %p116
        %p278 = pneg %p113
        %p279 = scmp.lt.s32.totalorder %s28, 0
        %s280 = scalar_select %p279, %s28, 0
        %s281 = smul.addr %s280, 8
        %s282 = scalar_lea.vmem %s3, %s281
        %p283 = pneg %p142
        %p284 = pneg %p139
        %p285 = pneg %p172
        %p286 = pneg %p169
        %s287 = sand.u32 %s159, 1
        %s288 = scalar_lea.sflag [#allocation6], %s287
        %s289 = sand.u32 %s159, 1
        %s290 = smul.addr %s289, 16
        %s291 = scalar_lea.vmem [#allocation9], %s290
        %p292 = scmp.lt.s32.totalorder %s27, 1
        %s293 = scalar_select %p292, %s27, 1
        %s294 = smul.addr %s293, 2
        %s295 = scalar_lea.vmem %s1, %s294
        %p296 = scmp.lt.s32.totalorder %s28, 0
        %s297 = scalar_select %p296, %s28, 0
        %s298 = smul.addr %s297, 8
        %s299 = scalar_lea.vmem %s3, %s298
        %s300 = smul.u32 4, %s29
        %p302 = scmp.eq.s32.totalorder %s29, 0
        // Predicated region
        $region45: #{tpu_custom_call.1} parent=35 // pred_check
          %p303 = pneg %p302
        $region46: #{tpu_custom_call.1} parent=35 // pred_check_branch
          %305 = sbr.rel (%p303) target = $region48
        $region47: #{tpu_custom_call.1} parent=35 // pred_region
          %v306 = vld [vmem:[#allocation4] sm:$0xff]
          %v307 = vld [vmem:[#allocation4 + $0x8] sm:$0xff]
          %v308 = vld [vmem:[%s295] sm:$0x3]
          %v310 = vperm.slane %v308, 0
          %v311 = vperm.slane %v308, 1
          %v314 = vmul.f32 %v306, %v310
          %v315 = vmul.f32 %v307, %v311
          %v316 = vmul.f32 %v314, %v314
          %v317 = vmul.f32 %v315, %v315
          %vm318 = vcmask 719872
          %v319 = vsel %vm318, %v317, 0.0
          %v320 = vadd.f32 %v316, %v319
          %321 = vadd.xlane.f32.xlu0 %v320
          %v322 = vpop.xlane.xlu0 %321
          %v323 = vadd.f32 %v322, 1e-08
          %v324 = vrsqrt.pop %v323
          %v325 = vmul.f32 %v324, %v323
          %v326 = vmul.f32 %v325, %v324
          %v327 = vmul.f32 0.5, %v326
          %v328 = vsub.f32 1.5, %v327
          %v329 = vmul.f32 %v324, %v328
          %vm330 = vweird.f32 %v323
          %vm331 = vweird.f32 %v324
          %vm332 = vmor %vm330, %vm331
          %v333 = vsel %vm332, %v324, %v329
          %v334 = vmul.f32 %v314, %v333
          %v335 = vmul.f32 %v315, %v333
          %v336 = vpack.c.bf16 %v335, %v334
          %vm337 = vcmask 1043456
          %vm338 = vcmask 719876
          %vm339 = vmor %vm338, %vm337
          %340 = vst.msk [vmem:[#allocation2] sm:$0xff] %vm339, %v336
        $region48: #{tpu_custom_call.1} parent=35 // pred_fallthru
          _
        %v341 = vld [vmem:[%s299] sm:$0xff]
        %v342 = vld [vmem:[%s258] sm:$0xff]
        %343 = vst [vmem:[#allocation3] sm:$0xff] %v342
        %v344 = vld [vmem:[%s258] sm:$0xff]
        %v345 = vld [vmem:[%s258 + $0x8] sm:$0xf]
        %348 = vrot.lane.b32.xlu0 %v344, 127
        %v349 = vpop.permute.xlu0 %348
        %350 = vrot.lane.b32.xlu0 %v345, 127
        %v351 = vpop.permute.xlu0 %350
        %v352 = vrot.slane %v349, 4
        %v353 = vrot.slane %v351, 4
        %vm354 = vcmask 1043456
        %v355 = vsel %vm354, %v352, %v353
        %vm356 = vcmask 1039360
        %v357 = vsel %vm356, %v349, %v355
        %359 = vst [vmem:[#allocation3 + $0x8] sm:$0xff] %v357
        %v360 = vld [vmem:[%s258] sm:$0xff]
        %v361 = vld [vmem:[%s258 + $0x8] sm:$0xf]
        %364 = vrot.lane.b32.xlu0 %v360, 126
        %v365 = vpop.permute.xlu0 %364
        %366 = vrot.lane.b32.xlu0 %v361, 126
        %v367 = vpop.permute.xlu0 %366
        %v368 = vrot.slane %v365, 4
        %v369 = vrot.slane %v367, 4
        %v370 = vsel %vm354, %v368, %v369
        %vm371 = vcmask 1031168
        %v372 = vsel %vm371, %v365, %v370
        %374 = vst [vmem:[#allocation3 + $0x10] sm:$0xff] %v372
        %v375 = vld [vmem:[%s258] sm:$0xff]
        %v376 = vld [vmem:[%s258 + $0x8] sm:$0xf]
        %379 = vrot.lane.b32.xlu0 %v375, 120
        %v380 = vpop.permute.xlu0 %379
        %381 = vrot.lane.b32.xlu0 %v376, 120
        %v382 = vpop.permute.xlu0 %381
        %v383 = vrot.slane %v380, 4
        %v384 = vrot.slane %v382, 4
        %v385 = vsel %vm354, %v383, %v384
        %vm386 = vcmask 982016
        %v387 = vsel %vm386, %v380, %v385
        %389 = vst [vmem:[#allocation3 + $0x18] sm:$0xff] %v387
        %v390 = vld [vmem:[%s258] sm:$0xff]
        %v391 = vld [vmem:[%s258 + $0x8] sm:$0xf]
        %394 = vrot.lane.b32.xlu0 %v390, 119
        %v395 = vpop.permute.xlu0 %394
        %396 = vrot.lane.b32.xlu0 %v391, 119
        %v397 = vpop.permute.xlu0 %396
        %v398 = vrot.slane %v395, 4
        %v399 = vrot.slane %v397, 4
        %v400 = vsel %vm354, %v398, %v399
        %vm401 = vcmask 973824
        %v402 = vsel %vm401, %v395, %v400
        %404 = vst [vmem:[#allocation3 + $0x20] sm:$0xff] %v402
        %v405 = vld [vmem:[%s258] sm:$0xff]
        %v406 = vld [vmem:[%s258 + $0x8] sm:$0xf]
        %409 = vrot.lane.b32.xlu0 %v405, 118
        %v410 = vpop.permute.xlu0 %409
        %411 = vrot.lane.b32.xlu0 %v406, 118
        %v412 = vpop.permute.xlu0 %411
        %v413 = vrot.slane %v410, 4
        %v414 = vrot.slane %v412, 4
        %v415 = vsel %vm354, %v413, %v414
        %vm416 = vcmask 965632
        %v417 = vsel %vm416, %v410, %v415
        %419 = vst [vmem:[#allocation3 + $0x28] sm:$0xff] %v417
        %v420 = vld [vmem:[%s258] sm:$0xff]
        %v421 = vld [vmem:[%s258 + $0x8] sm:$0xf]
        %424 = vrot.lane.b32.xlu0 %v420, 112
        %v425 = vpop.permute.xlu0 %424
        %426 = vrot.lane.b32.xlu0 %v421, 112
        %v427 = vpop.permute.xlu0 %426
        %v428 = vrot.slane %v425, 4
        %v429 = vrot.slane %v427, 4
        %v430 = vsel %vm354, %v428, %v429
        %vm431 = vcmask 916480
        %v432 = vsel %vm431, %v425, %v430
        %434 = vst [vmem:[#allocation3 + $0x30] sm:$0xff] %v432
        %v435 = vld [vmem:[%s258] sm:$0xff]
        %v436 = vld [vmem:[%s258 + $0x8] sm:$0xf]
        %439 = vrot.lane.b32.xlu0 %v435, 111
        %v440 = vpop.permute.xlu0 %439
        %441 = vrot.lane.b32.xlu0 %v436, 111
        %v442 = vpop.permute.xlu0 %441
        %v443 = vrot.slane %v440, 4
        %v444 = vrot.slane %v442, 4
        %v445 = vsel %vm354, %v443, %v444
        %vm446 = vcmask 908288
        %v447 = vsel %vm446, %v440, %v445
        %449 = vst [vmem:[#allocation3 + $0x38] sm:$0xff] %v447
        %v450 = vld [vmem:[%s258] sm:$0xff]
        %v451 = vld [vmem:[%s258 + $0x8] sm:$0xf]
        %454 = vrot.lane.b32.xlu0 %v450, 110
        %v455 = vpop.permute.xlu0 %454
        %456 = vrot.lane.b32.xlu0 %v451, 110
        %v457 = vpop.permute.xlu0 %456
        %v458 = vrot.slane %v455, 4
        %v459 = vrot.slane %v457, 4
        %v460 = vsel %vm354, %v458, %v459
        %vm461 = vcmask 900096
        %v462 = vsel %vm461, %v455, %v460
        %464 = vst [vmem:[#allocation3 + $0x40] sm:$0xff] %v462
        %v465 = vld [vmem:[%s258] sm:$0xff]
        %v466 = vld [vmem:[%s258 + $0x8] sm:$0xf]
        %469 = vrot.lane.b32.xlu0 %v465, 64
        %v470 = vpop.permute.xlu0 %469
        %471 = vrot.lane.b32.xlu0 %v466, 64
        %v472 = vpop.permute.xlu0 %471
        %v473 = vrot.slane %v470, 4
        %v474 = vrot.slane %v472, 4
        %v475 = vsel %vm354, %v473, %v474
        %vm476 = vcmask 523264
        %v477 = vsel %vm476, %v470, %v475
        %479 = vst [vmem:[#allocation3 + $0x48] sm:$0xff] %v477
        %v480 = vld [vmem:[%s258] sm:$0xff]
        %v481 = vld [vmem:[%s258 + $0x8] sm:$0xf]
        %484 = vrot.lane.b32.xlu0 %v480, 63
        %v485 = vpop.permute.xlu0 %484
        %486 = vrot.lane.b32.xlu0 %v481, 63
        %v487 = vpop.permute.xlu0 %486
        %v488 = vrot.slane %v485, 4
        %v489 = vrot.slane %v487, 4
        %v490 = vsel %vm354, %v488, %v489
        %vm491 = vcmask 515072
        %v492 = vsel %vm491, %v485, %v490
        %494 = vst [vmem:[#allocation3 + $0x50] sm:$0xff] %v492
        %v495 = vld [vmem:[%s258] sm:$0xff]
        %v496 = vld [vmem:[%s258 + $0x8] sm:$0xf]
        %499 = vrot.lane.b32.xlu0 %v495, 62
        %v500 = vpop.permute.xlu0 %499
        %501 = vrot.lane.b32.xlu0 %v496, 62
        %v502 = vpop.permute.xlu0 %501
        %v503 = vrot.slane %v500, 4
        %v504 = vrot.slane %v502, 4
        %v505 = vsel %vm354, %v503, %v504
        %vm506 = vcmask 506880
        %v507 = vsel %vm506, %v500, %v505
        %509 = vst [vmem:[#allocation3 + $0x58] sm:$0xff] %v507
        %v510 = vld [vmem:[%s258] sm:$0xff]
        %v511 = vld [vmem:[%s258 + $0x8] sm:$0xf]
        %514 = vrot.lane.b32.xlu0 %v510, 56
        %v515 = vpop.permute.xlu0 %514
        %516 = vrot.lane.b32.xlu0 %v511, 56
        %v517 = vpop.permute.xlu0 %516
        %v518 = vrot.slane %v515, 4
        %v519 = vrot.slane %v517, 4
        %v520 = vsel %vm354, %v518, %v519
        %vm521 = vcmask 457728
        %v522 = vsel %vm521, %v515, %v520
        %524 = vst [vmem:[#allocation3 + $0x60] sm:$0xff] %v522
        %v525 = vld [vmem:[%s258] sm:$0xff]
        %v526 = vld [vmem:[%s258 + $0x8] sm:$0xf]
        %529 = vrot.lane.b32.xlu0 %v525, 55
        %v530 = vpop.permute.xlu0 %529
        %531 = vrot.lane.b32.xlu0 %v526, 55
        %v532 = vpop.permute.xlu0 %531
        %v533 = vrot.slane %v530, 4
        %v534 = vrot.slane %v532, 4
        %v535 = vsel %vm354, %v533, %v534
        %vm536 = vcmask 449536
        %v537 = vsel %vm536, %v530, %v535
        %539 = vst [vmem:[#allocation3 + $0x68] sm:$0xff] %v537
        %v540 = vld [vmem:[%s258] sm:$0xff]
        %v541 = vld [vmem:[%s258 + $0x8] sm:$0xf]
        %544 = vrot.lane.b32.xlu0 %v540, 54
        %v545 = vpop.permute.xlu0 %544
        %546 = vrot.lane.b32.xlu0 %v541, 54
        %v547 = vpop.permute.xlu0 %546
        %v548 = vrot.slane %v545, 4
        %v549 = vrot.slane %v547, 4
        %v550 = vsel %vm354, %v548, %v549
        %vm551 = vcmask 441344
        %v552 = vsel %vm551, %v545, %v550
        %554 = vst [vmem:[#allocation3 + $0x70] sm:$0xff] %v552
        %v555 = vld [vmem:[%s258] sm:$0xff]
        %v556 = vld [vmem:[%s258 + $0x8] sm:$0xf]
        %559 = vrot.lane.b32.xlu0 %v555, 48
        %v560 = vpop.permute.xlu0 %559
        %561 = vrot.lane.b32.xlu0 %v556, 48
        %v562 = vpop.permute.xlu0 %561
        %v563 = vrot.slane %v560, 4
        %v564 = vrot.slane %v562, 4
        %v565 = vsel %vm354, %v563, %v564
        %vm566 = vcmask 392192
        %v567 = vsel %vm566, %v560, %v565
        %569 = vst [vmem:[#allocation3 + $0x78] sm:$0xff] %v567
        %v570 = vld [vmem:[%s258] sm:$0xff]
        %v571 = vld [vmem:[%s258 + $0x8] sm:$0xf]
        %574 = vrot.lane.b32.xlu0 %v570, 47
        %v575 = vpop.permute.xlu0 %574
        %576 = vrot.lane.b32.xlu0 %v571, 47
        %v577 = vpop.permute.xlu0 %576
        %v578 = vrot.slane %v575, 4
        %v579 = vrot.slane %v577, 4
        %v580 = vsel %vm354, %v578, %v579
        %vm581 = vcmask 384000
        %v582 = vsel %vm581, %v575, %v580
        %584 = vst [vmem:[#allocation3 + $0x80] sm:$0xff] %v582
        %v585 = vld [vmem:[%s258] sm:$0xff]
        %v586 = vld [vmem:[%s258 + $0x8] sm:$0xf]
        %589 = vrot.lane.b32.xlu0 %v585, 46
        %v590 = vpop.permute.xlu0 %589
        %591 = vrot.lane.b32.xlu0 %v586, 46
        %v592 = vpop.permute.xlu0 %591
        %v593 = vrot.slane %v590, 4
        %v594 = vrot.slane %v592, 4
        %v595 = vsel %vm354, %v593, %v594
        %vm596 = vcmask 375808
        %v597 = vsel %vm596, %v590, %v595
        %599 = vst [vmem:[#allocation3 + $0x88] sm:$0xff] %v597
        %v600 = vld [vmem:[%s258 + $0x4] sm:$0xff]
        %601 = vst [vmem:[#allocation3 + $0x90] sm:$0xff] %v600
        %v602 = vld [vmem:[%s258 + $0x4] sm:$0xff]
        %v603 = vld [vmem:[%s258 + $0xc] sm:$0xf]
        %606 = vrot.lane.b32.xlu0 %v602, 127
        %v607 = vpop.permute.xlu0 %606
        %608 = vrot.lane.b32.xlu0 %v603, 127
        %v609 = vpop.permute.xlu0 %608
        %v610 = vrot.slane %v607, 4
        %v611 = vrot.slane %v609, 4
        %v612 = vsel %vm354, %v610, %v611
        %v613 = vsel %vm356, %v607, %v612
        %615 = vst [vmem:[#allocation3 + $0x98] sm:$0xff] %v613
        %v616 = vld [vmem:[%s258 + $0x4] sm:$0xff]
        %v617 = vld [vmem:[%s258 + $0xc] sm:$0xf]
        %620 = vrot.lane.b32.xlu0 %v616, 126
        %v621 = vpop.permute.xlu0 %620
        %622 = vrot.lane.b32.xlu0 %v617, 126
        %v623 = vpop.permute.xlu0 %622
        %v624 = vrot.slane %v621, 4
        %v625 = vrot.slane %v623, 4
        %v626 = vsel %vm354, %v624, %v625
        %v627 = vsel %vm371, %v621, %v626
        %629 = vst [vmem:[#allocation3 + $0xa0] sm:$0xff] %v627
        %v630 = vld [vmem:[%s258 + $0x4] sm:$0xff]
        %v631 = vld [vmem:[%s258 + $0xc] sm:$0xf]
        %634 = vrot.lane.b32.xlu0 %v630, 120
        %v635 = vpop.permute.xlu0 %634
        %636 = vrot.lane.b32.xlu0 %v631, 120
        %v637 = vpop.permute.xlu0 %636
        %v638 = vrot.slane %v635, 4
        %v639 = vrot.slane %v637, 4
        %v640 = vsel %vm354, %v638, %v639
        %v641 = vsel %vm386, %v635, %v640
        %643 = vst [vmem:[#allocation3 + $0xa8] sm:$0xff] %v641
        %v644 = vld [vmem:[%s258 + $0x4] sm:$0xff]
        %v645 = vld [vmem:[%s258 + $0xc] sm:$0xf]
        %648 = vrot.lane.b32.xlu0 %v644, 119
        %v649 = vpop.permute.xlu0 %648
        %650 = vrot.lane.b32.xlu0 %v645, 119
        %v651 = vpop.permute.xlu0 %650
        %v652 = vrot.slane %v649, 4
        %v653 = vrot.slane %v651, 4
        %v654 = vsel %vm354, %v652, %v653
        %v655 = vsel %vm401, %v649, %v654
        %657 = vst [vmem:[#allocation3 + $0xb0] sm:$0xff] %v655
        %v658 = vld [vmem:[%s258 + $0x4] sm:$0xff]
        %v659 = vld [vmem:[%s258 + $0xc] sm:$0xf]
        %662 = vrot.lane.b32.xlu0 %v658, 118
        %v663 = vpop.permute.xlu0 %662
        %664 = vrot.lane.b32.xlu0 %v659, 118
        %v665 = vpop.permute.xlu0 %664
        %v666 = vrot.slane %v663, 4
        %v667 = vrot.slane %v665, 4
        %v668 = vsel %vm354, %v666, %v667
        %v669 = vsel %vm416, %v663, %v668
        %671 = vst [vmem:[#allocation3 + $0xb8] sm:$0xff] %v669
        %v672 = vld [vmem:[%s258 + $0x4] sm:$0xff]
        %v673 = vld [vmem:[%s258 + $0xc] sm:$0xf]
        %676 = vrot.lane.b32.xlu0 %v672, 112
        %v677 = vpop.permute.xlu0 %676
        %678 = vrot.lane.b32.xlu0 %v673, 112
        %v679 = vpop.permute.xlu0 %678
        %v680 = vrot.slane %v677, 4
        %v681 = vrot.slane %v679, 4
        %v682 = vsel %vm354, %v680, %v681
        %v683 = vsel %vm431, %v677, %v682
        %685 = vst [vmem:[#allocation3 + $0xc0] sm:$0xff] %v683
        %v686 = vld [vmem:[%s258 + $0x4] sm:$0xff]
        %v687 = vld [vmem:[%s258 + $0xc] sm:$0xf]
        %690 = vrot.lane.b32.xlu0 %v686, 111
        %v691 = vpop.permute.xlu0 %690
        %692 = vrot.lane.b32.xlu0 %v687, 111
        %v693 = vpop.permute.xlu0 %692
        %v694 = vrot.slane %v691, 4
        %v695 = vrot.slane %v693, 4
        %v696 = vsel %vm354, %v694, %v695
        %v697 = vsel %vm446, %v691, %v696
        %699 = vst [vmem:[#allocation3 + $0xc8] sm:$0xff] %v697
        %v700 = vld [vmem:[%s258 + $0x4] sm:$0xff]
        %v701 = vld [vmem:[%s258 + $0xc] sm:$0xf]
        %704 = vrot.lane.b32.xlu0 %v700, 110
        %v705 = vpop.permute.xlu0 %704
        %706 = vrot.lane.b32.xlu0 %v701, 110
        %v707 = vpop.permute.xlu0 %706
        %v708 = vrot.slane %v705, 4
        %v709 = vrot.slane %v707, 4
        %v710 = vsel %vm354, %v708, %v709
        %v711 = vsel %vm461, %v705, %v710
        %713 = vst [vmem:[#allocation3 + $0xd0] sm:$0xff] %v711
        %v714 = vld [vmem:[%s258 + $0x8] sm:$0xff]
        %s715 = scalar_lea.vmem [#allocation3], 216
        %716 = vst [vmem:[%s715] sm:$0xff] %v714
        %v717 = vld [vmem:[%s258 + $0x8] sm:$0xff]
        %v718 = vld [vmem:[%s258 + $0x10] sm:$0xf]
        %721 = vrot.lane.b32.xlu0 %v717, 127
        %v722 = vpop.permute.xlu0 %721
        %723 = vrot.lane.b32.xlu0 %v718, 127
        %v724 = vpop.permute.xlu0 %723
        %v725 = vrot.slane %v722, 4
        %v726 = vrot.slane %v724, 4
        %v727 = vsel %vm354, %v725, %v726
        %v728 = vsel %vm356, %v722, %v727
        %730 = vst [vmem:[%s715 + $0x8] sm:$0xff] %v728
        %v731 = vld [vmem:[%s258 + $0x8] sm:$0xff]
        %v732 = vld [vmem:[%s258 + $0x10] sm:$0xf]
        %735 = vrot.lane.b32.xlu0 %v731, 126
        %v736 = vpop.permute.xlu0 %735
        %737 = vrot.lane.b32.xlu0 %v732, 126
        %v738 = vpop.permute.xlu0 %737
        %v739 = vrot.slane %v736, 4
        %v740 = vrot.slane %v738, 4
        %v741 = vsel %vm354, %v739, %v740
        %v742 = vsel %vm371, %v736, %v741
        %744 = vst [vmem:[%s715 + $0x10] sm:$0xff] %v742
        %v745 = vld [vmem:[%s258 + $0x8] sm:$0xff]
        %v746 = vld [vmem:[%s258 + $0x10] sm:$0xf]
        %749 = vrot.lane.b32.xlu0 %v745, 120
        %v750 = vpop.permute.xlu0 %749
        %751 = vrot.lane.b32.xlu0 %v746, 120
        %v752 = vpop.permute.xlu0 %751
        %v753 = vrot.slane %v750, 4
        %v754 = vrot.slane %v752, 4
        %v755 = vsel %vm354, %v753, %v754
        %v756 = vsel %vm386, %v750, %v755
        %758 = vst [vmem:[%s715 + $0x18] sm:$0xff] %v756
        %v759 = vld [vmem:[%s258 + $0x8] sm:$0xff]
        %v760 = vld [vmem:[%s258 + $0x10] sm:$0xf]
        %763 = vrot.lane.b32.xlu0 %v759, 119
        %v764 = vpop.permute.xlu0 %763
        %765 = vrot.lane.b32.xlu0 %v760, 119
        %v766 = vpop.permute.xlu0 %765
        %v767 = vrot.slane %v764, 4
        %v768 = vrot.slane %v766, 4
        %v769 = vsel %vm354, %v767, %v768
        %v770 = vsel %vm401, %v764, %v769
        %772 = vst [vmem:[%s715 + $0x20] sm:$0xff] %v770
        %v773 = vld [vmem:[%s258 + $0x8] sm:$0xff]
        %v774 = vld [vmem:[%s258 + $0x10] sm:$0xf]
        %777 = vrot.lane.b32.xlu0 %v773, 118
        %v778 = vpop.permute.xlu0 %777
        %779 = vrot.lane.b32.xlu0 %v774, 118
        %v780 = vpop.permute.xlu0 %779
        %v781 = vrot.slane %v778, 4
        %v782 = vrot.slane %v780, 4
        %v783 = vsel %vm354, %v781, %v782
        %v784 = vsel %vm416, %v778, %v783
        %786 = vst [vmem:[%s715 + $0x28] sm:$0xff] %v784
        %v787 = vld [vmem:[%s258 + $0x8] sm:$0xff]
        %v788 = vld [vmem:[%s258 + $0x10] sm:$0xf]
        %791 = vrot.lane.b32.xlu0 %v787, 112
        %v792 = vpop.permute.xlu0 %791
        %793 = vrot.lane.b32.xlu0 %v788, 112
        %v794 = vpop.permute.xlu0 %793
        %v795 = vrot.slane %v792, 4
        %v796 = vrot.slane %v794, 4
        %v797 = vsel %vm354, %v795, %v796
        %v798 = vsel %vm431, %v792, %v797
        %800 = vst [vmem:[%s715 + $0x30] sm:$0xff] %v798
        %v801 = vld [vmem:[%s258 + $0x8] sm:$0xff]
        %v802 = vld [vmem:[%s258 + $0x10] sm:$0xf]
        %805 = vrot.lane.b32.xlu0 %v801, 111
        %v806 = vpop.permute.xlu0 %805
        %807 = vrot.lane.b32.xlu0 %v802, 111
        %v808 = vpop.permute.xlu0 %807
        %v809 = vrot.slane %v806, 4
        %v810 = vrot.slane %v808, 4
        %v811 = vsel %vm354, %v809, %v810
        %v812 = vsel %vm446, %v806, %v811
        %814 = vst [vmem:[%s715 + $0x38] sm:$0xff] %v812
        %v815 = vld [vmem:[%s258 + $0x8] sm:$0xff]
        %v816 = vld [vmem:[%s258 + $0x10] sm:$0xf]
        %819 = vrot.lane.b32.xlu0 %v815, 110
        %v820 = vpop.permute.xlu0 %819
        %821 = vrot.lane.b32.xlu0 %v816, 110
        %v822 = vpop.permute.xlu0 %821
        %v823 = vrot.slane %v820, 4
        %v824 = vrot.slane %v822, 4
        %v825 = vsel %vm354, %v823, %v824
        %v826 = vsel %vm461, %v820, %v825
        %828 = vst [vmem:[%s715 + $0x40] sm:$0xff] %v826
        %v829 = vld [vmem:[%s258 + $0x8] sm:$0xff]
        %v830 = vld [vmem:[%s258 + $0x10] sm:$0xf]
        %833 = vrot.lane.b32.xlu0 %v829, 64
        %v834 = vpop.permute.xlu0 %833
        %835 = vrot.lane.b32.xlu0 %v830, 64
        %v836 = vpop.permute.xlu0 %835
        %v837 = vrot.slane %v834, 4
        %v838 = vrot.slane %v836, 4
        %v839 = vsel %vm354, %v837, %v838
        %v840 = vsel %vm476, %v834, %v839
        %842 = vst [vmem:[%s715 + $0x48] sm:$0xff] %v840
        %v843 = vld [vmem:[%s258 + $0x8] sm:$0xff]
        %v844 = vld [vmem:[%s258 + $0x10] sm:$0xf]
        %847 = vrot.lane.b32.xlu0 %v843, 63
        %v848 = vpop.permute.xlu0 %847
        %849 = vrot.lane.b32.xlu0 %v844, 63
        %v850 = vpop.permute.xlu0 %849
        %v851 = vrot.slane %v848, 4
        %v852 = vrot.slane %v850, 4
        %v853 = vsel %vm354, %v851, %v852
        %v854 = vsel %vm491, %v848, %v853
        %856 = vst [vmem:[%s715 + $0x50] sm:$0xff] %v854
        %v857 = vld [vmem:[%s258 + $0x8] sm:$0xff]
        %v858 = vld [vmem:[%s258 + $0x10] sm:$0xf]
        %861 = vrot.lane.b32.xlu0 %v857, 62
        %v862 = vpop.permute.xlu0 %861
        %863 = vrot.lane.b32.xlu0 %v858, 62
        %v864 = vpop.permute.xlu0 %863
        %v865 = vrot.slane %v862, 4
        %v866 = vrot.slane %v864, 4
        %v867 = vsel %vm354, %v865, %v866
        %v868 = vsel %vm506, %v862, %v867
        %870 = vst [vmem:[%s715 + $0x58] sm:$0xff] %v868
        %v871 = vld [vmem:[%s258 + $0x8] sm:$0xff]
        %v872 = vld [vmem:[%s258 + $0x10] sm:$0xf]
        %875 = vrot.lane.b32.xlu0 %v871, 56
        %v876 = vpop.permute.xlu0 %875
        %877 = vrot.lane.b32.xlu0 %v872, 56
        %v878 = vpop.permute.xlu0 %877
        %v879 = vrot.slane %v876, 4
        %v880 = vrot.slane %v878, 4
        %v881 = vsel %vm354, %v879, %v880
        %v882 = vsel %vm521, %v876, %v881
        %884 = vst [vmem:[%s715 + $0x60] sm:$0xff] %v882
        %v885 = vld [vmem:[%s258 + $0x8] sm:$0xff]
        %v886 = vld [vmem:[%s258 + $0x10] sm:$0xf]
        %889 = vrot.lane.b32.xlu0 %v885, 55
        %v890 = vpop.permute.xlu0 %889
        %891 = vrot.lane.b32.xlu0 %v886, 55
        %v892 = vpop.permute.xlu0 %891
        %v893 = vrot.slane %v890, 4
        %v894 = vrot.slane %v892, 4
        %v895 = vsel %vm354, %v893, %v894
        %v896 = vsel %vm536, %v890, %v895
        %898 = vst [vmem:[%s715 + $0x68] sm:$0xff] %v896
        %v899 = vld [vmem:[%s258 + $0x8] sm:$0xff]
        %v900 = vld [vmem:[%s258 + $0x10] sm:$0xf]
        %903 = vrot.lane.b32.xlu0 %v899, 54
        %v904 = vpop.permute.xlu0 %903
        %905 = vrot.lane.b32.xlu0 %v900, 54
        %v906 = vpop.permute.xlu0 %905
        %v907 = vrot.slane %v904, 4
        %v908 = vrot.slane %v906, 4
        %v909 = vsel %vm354, %v907, %v908
        %v910 = vsel %vm551, %v904, %v909
        %912 = vst [vmem:[%s715 + $0x70] sm:$0xff] %v910
        %v913 = vld [vmem:[%s258 + $0x8] sm:$0xff]
        %v914 = vld [vmem:[%s258 + $0x10] sm:$0xf]
        %917 = vrot.lane.b32.xlu0 %v913, 48
        %v918 = vpop.permute.xlu0 %917
        %919 = vrot.lane.b32.xlu0 %v914, 48
        %v920 = vpop.permute.xlu0 %919
        %v921 = vrot.slane %v918, 4
        %v922 = vrot.slane %v920, 4
        %v923 = vsel %vm354, %v921, %v922
        %v924 = vsel %vm566, %v918, %v923
        %926 = vst [vmem:[%s715 + $0x78] sm:$0xff] %v924
        %v927 = vld [vmem:[%s258 + $0x8] sm:$0xff]
        %v928 = vld [vmem:[%s258 + $0x10] sm:$0xf]
        %931 = vrot.lane.b32.xlu0 %v927, 47
        %v932 = vpop.permute.xlu0 %931
        %933 = vrot.lane.b32.xlu0 %v928, 47
        %v934 = vpop.permute.xlu0 %933
        %v935 = vrot.slane %v932, 4
        %v936 = vrot.slane %v934, 4
        %v937 = vsel %vm354, %v935, %v936
        %v938 = vsel %vm581, %v932, %v937
        %940 = vst [vmem:[%s715 + $0x80] sm:$0xff] %v938
        %v941 = vld [vmem:[%s258 + $0x8] sm:$0xff]
        %v942 = vld [vmem:[%s258 + $0x10] sm:$0xf]
        %945 = vrot.lane.b32.xlu0 %v941, 46
        %v946 = vpop.permute.xlu0 %945
        %947 = vrot.lane.b32.xlu0 %v942, 46
        %v948 = vpop.permute.xlu0 %947
        %v949 = vrot.slane %v946, 4
        %v950 = vrot.slane %v948, 4
        %v951 = vsel %vm354, %v949, %v950
        %v952 = vsel %vm596, %v946, %v951
        %954 = vst [vmem:[%s715 + $0x88] sm:$0xff] %v952
        %v955 = vld [vmem:[%s258 + $0xc] sm:$0xff]
        %956 = vst [vmem:[%s715 + $0x90] sm:$0xff] %v955
        %v957 = vld [vmem:[%s258 + $0xc] sm:$0xff]
        %v958 = vld [vmem:[%s258 + $0x14] sm:$0xf]
        %961 = vrot.lane.b32.xlu0 %v957, 127
        %v962 = vpop.permute.xlu0 %961
        %963 = vrot.lane.b32.xlu0 %v958, 127
        %v964 = vpop.permute.xlu0 %963
        %v965 = vrot.slane %v962, 4
        %v966 = vrot.slane %v964, 4
        %v967 = vsel %vm354, %v965, %v966
        %v968 = vsel %vm356, %v962, %v967
        %970 = vst [vmem:[%s715 + $0x98] sm:$0xff] %v968
        %v971 = vld [vmem:[%s258 + $0xc] sm:$0xff]
        %v972 = vld [vmem:[%s258 + $0x14] sm:$0xf]
        %975 = vrot.lane.b32.xlu0 %v971, 126
        %v976 = vpop.permute.xlu0 %975
        %977 = vrot.lane.b32.xlu0 %v972, 126
        %v978 = vpop.permute.xlu0 %977
        %v979 = vrot.slane %v976, 4
        %v980 = vrot.slane %v978, 4
        %v981 = vsel %vm354, %v979, %v980
        %v982 = vsel %vm371, %v976, %v981
        %984 = vst [vmem:[%s715 + $0xa0] sm:$0xff] %v982
        %v985 = vld [vmem:[%s258 + $0xc] sm:$0xff]
        %v986 = vld [vmem:[%s258 + $0x14] sm:$0xf]
        %989 = vrot.lane.b32.xlu0 %v985, 120
        %v990 = vpop.permute.xlu0 %989
        %991 = vrot.lane.b32.xlu0 %v986, 120
        %v992 = vpop.permute.xlu0 %991
        %v993 = vrot.slane %v990, 4
        %v994 = vrot.slane %v992, 4
        %v995 = vsel %vm354, %v993, %v994
        %v996 = vsel %vm386, %v990, %v995
        %998 = vst [vmem:[%s715 + $0xa8] sm:$0xff] %v996
        %v999 = vld [vmem:[%s258 + $0xc] sm:$0xff]
        %v1000 = vld [vmem:[%s258 + $0x14] sm:$0xf]
        %1003 = vrot.lane.b32.xlu0 %v999, 119
        %v1004 = vpop.permute.xlu0 %1003
        %1005 = vrot.lane.b32.xlu0 %v1000, 119
        %v1006 = vpop.permute.xlu0 %1005
        %v1007 = vrot.slane %v1004, 4
        %v1008 = vrot.slane %v1006, 4
        %v1009 = vsel %vm354, %v1007, %v1008
        %v1010 = vsel %vm401, %v1004, %v1009
        %1012 = vst [vmem:[%s715 + $0xb0] sm:$0xff] %v1010
        %v1013 = vld [vmem:[%s258 + $0xc] sm:$0xff]
        %v1014 = vld [vmem:[%s258 + $0x14] sm:$0xf]
        %1017 = vrot.lane.b32.xlu0 %v1013, 118
        %v1018 = vpop.permute.xlu0 %1017
        %1019 = vrot.lane.b32.xlu0 %v1014, 118
        %v1020 = vpop.permute.xlu0 %1019
        %v1021 = vrot.slane %v1018, 4
        %v1022 = vrot.slane %v1020, 4
        %v1023 = vsel %vm354, %v1021, %v1022
        %v1024 = vsel %vm416, %v1018, %v1023
        %1026 = vst [vmem:[%s715 + $0xb8] sm:$0xff] %v1024
        %v1027 = vld [vmem:[%s258 + $0xc] sm:$0xff]
        %v1028 = vld [vmem:[%s258 + $0x14] sm:$0xf]
        %1031 = vrot.lane.b32.xlu0 %v1027, 112
        %v1032 = vpop.permute.xlu0 %1031
        %1033 = vrot.lane.b32.xlu0 %v1028, 112
        %v1034 = vpop.permute.xlu0 %1033
        %v1035 = vrot.slane %v1032, 4
        %v1036 = vrot.slane %v1034, 4
        %v1037 = vsel %vm354, %v1035, %v1036
        %v1038 = vsel %vm431, %v1032, %v1037
        %1040 = vst [vmem:[%s715 + $0xc0] sm:$0xff] %v1038
        %v1041 = vld [vmem:[%s258 + $0xc] sm:$0xff]
        %v1042 = vld [vmem:[%s258 + $0x14] sm:$0xf]
        %1045 = vrot.lane.b32.xlu0 %v1041, 111
        %v1046 = vpop.permute.xlu0 %1045
        %1047 = vrot.lane.b32.xlu0 %v1042, 111
        %v1048 = vpop.permute.xlu0 %1047
        %v1049 = vrot.slane %v1046, 4
        %v1050 = vrot.slane %v1048, 4
        %v1051 = vsel %vm354, %v1049, %v1050
        %v1052 = vsel %vm446, %v1046, %v1051
        %1054 = vst [vmem:[%s715 + $0xc8] sm:$0xff] %v1052
        %v1055 = vld [vmem:[%s258 + $0xc] sm:$0xff]
        %v1056 = vld [vmem:[%s258 + $0x14] sm:$0xf]
        %1059 = vrot.lane.b32.xlu0 %v1055, 110
        %v1060 = vpop.permute.xlu0 %1059
        %1061 = vrot.lane.b32.xlu0 %v1056, 110
        %v1062 = vpop.permute.xlu0 %1061
        %v1063 = vrot.slane %v1060, 4
        %v1064 = vrot.slane %v1062, 4
        %v1065 = vsel %vm354, %v1063, %v1064
        %v1066 = vsel %vm461, %v1060, %v1065
        %1068 = vst [vmem:[%s715 + $0xd0] sm:$0xff] %v1066
        %v1069 = vld [vmem:[#allocation2] sm:$0xff]
        %v1070 = vld [vmem:[#allocation3] sm:$0xff]
        %v1071 = vld [vmem:[#allocation3 + $0x8] sm:$0xff]
        %v1072 = vld [vmem:[#allocation3 + $0x10] sm:$0xff]
        %v1073 = vld [vmem:[#allocation3 + $0x18] sm:$0xff]
        %v1074 = vld [vmem:[#allocation3 + $0x20] sm:$0xff]
        %v1075 = vld [vmem:[#allocation3 + $0x28] sm:$0xff]
        %v1076 = vld [vmem:[#allocation3 + $0x30] sm:$0xff]
        %v1077 = vld [vmem:[#allocation3 + $0x38] sm:$0xff]
        %v1078 = vld [vmem:[#allocation3 + $0x40] sm:$0xff]
        %v1079 = vld [vmem:[#allocation3 + $0x48] sm:$0xff]
        %v1080 = vld [vmem:[#allocation3 + $0x50] sm:$0xff]
        %v1081 = vld [vmem:[#allocation3 + $0x58] sm:$0xff]
        %v1082 = vld [vmem:[#allocation3 + $0x60] sm:$0xff]
        %v1083 = vld [vmem:[#allocation3 + $0x68] sm:$0xff]
        %v1084 = vld [vmem:[#allocation3 + $0x70] sm:$0xff]
        %v1085 = vld [vmem:[#allocation3 + $0x78] sm:$0xff]
        %v1086 = vld [vmem:[#allocation3 + $0x80] sm:$0xff]
        %v1087 = vld [vmem:[#allocation3 + $0x88] sm:$0xff]
        %v1088 = vld [vmem:[#allocation3 + $0x90] sm:$0xff]
        %v1089 = vld [vmem:[#allocation3 + $0x98] sm:$0xff]
        %v1090 = vld [vmem:[#allocation3 + $0xa0] sm:$0xff]
        %v1091 = vld [vmem:[#allocation3 + $0xa8] sm:$0xff]
        %v1092 = vld [vmem:[#allocation3 + $0xb0] sm:$0xff]
        %v1093 = vld [vmem:[#allocation3 + $0xb8] sm:$0xff]
        %v1094 = vld [vmem:[#allocation3 + $0xc0] sm:$0xff]
        %v1095 = vld [vmem:[#allocation3 + $0xc8] sm:$0xff]
        %v1096 = vld [vmem:[#allocation3 + $0xd0] sm:$0xff]
        %1098 = vset.pattern.permute.xlu0 0
        %1099 = vperm.xlu0 %1098, %v341
        %v1100 = vpop.permute.xlu0 %1099
        %v1103 = vunpack.c.l.b16 %v1069
        %v1104 = vunpack.c.h.b16 %v1069
        %v1105 = vpack.c.b16 %v1103, %v1103
        %v1106 = vpack.c.b16 %v1104, %v1104
        %v1135 = vunpack.c.l.b16 %v1070
        %v1136 = vunpack.c.h.b16 %v1070
        %v1137 = vunpack.c.l.b16 %v1071
        %v1138 = vunpack.c.h.b16 %v1071
        %v1139 = vunpack.c.l.b16 %v1072
        %v1140 = vunpack.c.h.b16 %v1072
        %v1141 = vunpack.c.l.b16 %v1073
        %v1142 = vunpack.c.h.b16 %v1073
        %v1143 = vunpack.c.l.b16 %v1074
        %v1144 = vunpack.c.h.b16 %v1074
        %v1145 = vunpack.c.l.b16 %v1075
        %v1146 = vunpack.c.h.b16 %v1075
        %v1147 = vunpack.c.l.b16 %v1076
        %v1148 = vunpack.c.h.b16 %v1076
        %v1149 = vunpack.c.l.b16 %v1077
        %v1150 = vunpack.c.h.b16 %v1077
        %v1151 = vunpack.c.l.b16 %v1078
        %v1152 = vunpack.c.h.b16 %v1078
        %v1153 = vunpack.c.l.b16 %v1079
        %v1154 = vunpack.c.h.b16 %v1079
        %v1155 = vunpack.c.l.b16 %v1080
        %v1156 = vunpack.c.h.b16 %v1080
        %v1157 = vunpack.c.l.b16 %v1081
        %v1158 = vunpack.c.h.b16 %v1081
        %v1159 = vunpack.c.l.b16 %v1082
        %v1160 = vunpack.c.h.b16 %v1082
        %v1161 = vunpack.c.l.b16 %v1083
        %v1162 = vunpack.c.h.b16 %v1083
        %v1163 = vunpack.c.l.b16 %v1084
        %v1164 = vunpack.c.h.b16 %v1084
        %v1165 = vunpack.c.l.b16 %v1085
        %v1166 = vunpack.c.h.b16 %v1085
        %v1167 = vunpack.c.l.b16 %v1086
        %v1168 = vunpack.c.h.b16 %v1086
        %v1169 = vunpack.c.l.b16 %v1087
        %v1170 = vunpack.c.h.b16 %v1087
        %v1171 = vunpack.c.l.b16 %v1088
        %v1172 = vunpack.c.h.b16 %v1088
        %v1173 = vunpack.c.l.b16 %v1089
        %v1174 = vunpack.c.h.b16 %v1089
        %v1175 = vunpack.c.l.b16 %v1090
        %v1176 = vunpack.c.h.b16 %v1090
        %v1177 = vunpack.c.l.b16 %v1091
        %v1178 = vunpack.c.h.b16 %v1091
        %v1179 = vunpack.c.l.b16 %v1092
        %v1180 = vunpack.c.h.b16 %v1092
        %v1181 = vunpack.c.l.b16 %v1093
        %v1182 = vunpack.c.h.b16 %v1093
        %v1183 = vunpack.c.l.b16 %v1094
        %v1184 = vunpack.c.h.b16 %v1094
        %v1185 = vunpack.c.l.b16 %v1095
        %v1186 = vunpack.c.h.b16 %v1095
        %v1187 = vunpack.c.l.b16 %v1096
        %v1188 = vunpack.c.h.b16 %v1096
        %v1189 = vpack.c.b16 %v1137, %v1135
        %v1190 = vpack.c.b16 %v1138, %v1136
        %v1191 = vpack.c.b16 %v1141, %v1139
        %v1192 = vpack.c.b16 %v1142, %v1140
        %v1193 = vpack.c.b16 %v1145, %v1143
        %v1194 = vpack.c.b16 %v1146, %v1144
        %v1195 = vpack.c.b16 %v1149, %v1147
        %v1196 = vpack.c.b16 %v1150, %v1148
        %v1197 = vpack.c.b16 %v1153, %v1151
        %v1198 = vpack.c.b16 %v1154, %v1152
        %v1199 = vpack.c.b16 %v1157, %v1155
        %v1200 = vpack.c.b16 %v1158, %v1156
        %v1201 = vpack.c.b16 %v1161, %v1159
        %v1202 = vpack.c.b16 %v1162, %v1160
        %v1203 = vpack.c.b16 %v1165, %v1163
        %v1204 = vpack.c.b16 %v1166, %v1164
        %v1205 = vpack.c.b16 %v1169, %v1167
        %v1206 = vpack.c.b16 %v1170, %v1168
        %v1207 = vpack.c.b16 %v1173, %v1171
        %v1208 = vpack.c.b16 %v1174, %v1172
        %v1209 = vpack.c.b16 %v1177, %v1175
        %v1210 = vpack.c.b16 %v1178, %v1176
        %v1211 = vpack.c.b16 %v1181, %v1179
        %v1212 = vpack.c.b16 %v1182, %v1180
        %v1213 = vpack.c.b16 %v1185, %v1183
        %v1214 = vpack.c.b16 %v1186, %v1184
        %v1215 = vpack.c.b16 %v1187, %v1187
        %v1216 = vpack.c.b16 %v1188, %v1188
        %vm1243 = vcmask 719872
        %v1245 = vsel %vm1243, %v1106, 0
        %vm1247 = vcmask 1043456
        %v1249 = vsel %vm1247, %v1215, 0
        %v1252 = vsel %vm1247, %v1216, 0
        %1254 = vmatpush.bf16.msra.mxu0 %v1203
        %1255 = vmatpush.bf16.msra.mxu0 %v1201
        %1256 = vmatpush.bf16.msra.mxu0 %v1199
        %1257 = vmatpush.bf16.msra.mxu0 %v1197
        %1258 = vmatpush.bf16.msra.mxu0 %v1195
        %1259 = vmatpush.bf16.msra.mxu0 %v1193
        %1260 = vmatpush.bf16.msra.mxu0 %v1191
        %1261 = vmatpush.bf16.msra.mxu0 %v1189
        %1262 = vmatmul.bf16.gmra.mxu0 %v1105
        %v1263 = vpop.f32.mrf.mxu0
        %v1264 = vadd.f32 %v1100, %v1263
        %v1265 = vpop.f32.mrf.mxu0
        %1266 = vdwg.mxu0
        %1267 = vmatpush.bf16.msra.mxu0 0
        %1268 = vmatpush.bf16.msra.mxu0 0
        %1269 = vmatpush.bf16.msra.mxu0 %v1249
        %1270 = vmatpush.bf16.msra.mxu0 %v1213
        %1271 = vmatpush.bf16.msra.mxu0 %v1211
        %1272 = vmatpush.bf16.msra.mxu0 %v1209
        %1273 = vmatpush.bf16.msra.mxu0 %v1207
        %1274 = vmatpush.bf16.msra.mxu0 %v1205
        %1275 = vmatmul.bf16.gmra.mxu0 %v1245
        %v1276 = vpop.f32.mrf.mxu0
        %v1277 = vadd.f32 %v1264, %v1276
        %v1278 = vpop.f32.mrf.mxu0
        %1279 = vdwg.mxu0
        %1280 = vmatpush.bf16.msra.mxu0 %v1204
        %1281 = vmatpush.bf16.msra.mxu0 %v1202
        %1282 = vmatpush.bf16.msra.mxu0 %v1200
        %1283 = vmatpush.bf16.msra.mxu0 %v1198
        %1284 = vmatpush.bf16.msra.mxu0 %v1196
        %1285 = vmatpush.bf16.msra.mxu0 %v1194
        %1286 = vmatpush.bf16.msra.mxu0 %v1192
        %1287 = vmatpush.bf16.msra.mxu0 %v1190
        %1288 = vmatmul.bf16.gmra.mxu0 %v1105
        %v1289 = vpop.f32.mrf.mxu0
        %v1290 = vadd.f32 %v1100, %v1289
        %v1291 = vpop.f32.mrf.mxu0
        %1292 = vdwg.mxu0
        %1293 = vmatpush.bf16.msra.mxu0 0
        %1294 = vmatpush.bf16.msra.mxu0 0
        %1295 = vmatpush.bf16.msra.mxu0 %v1252
        %1296 = vmatpush.bf16.msra.mxu0 %v1214
        %1297 = vmatpush.bf16.msra.mxu0 %v1212
        %1298 = vmatpush.bf16.msra.mxu0 %v1210
        %1299 = vmatpush.bf16.msra.mxu0 %v1208
        %1300 = vmatpush.bf16.msra.mxu0 %v1206
        %1301 = vmatmul.bf16.gmra.mxu0 %v1245
        %v1302 = vpop.f32.mrf.mxu0
        %v1303 = vadd.f32 %v1290, %v1302
        %v1304 = vpop.f32.mrf.mxu0
        %1305 = vdwg.mxu0
        %v1306 = vpack.c.bf16 %v1303, %v1277
        %1307 = vst [vmem:[%s291] sm:$0xff] %v1306
        %v1308 = vld [vmem:[#allocation2] sm:$0xff]
        %v1309 = vld [vmem:[%s715] sm:$0xff]
        %v1310 = vld [vmem:[%s715 + $0x8] sm:$0xff]
        %v1311 = vld [vmem:[%s715 + $0x10] sm:$0xff]
        %v1312 = vld [vmem:[%s715 + $0x18] sm:$0xff]
        %v1313 = vld [vmem:[%s715 + $0x20] sm:$0xff]
        %v1314 = vld [vmem:[%s715 + $0x28] sm:$0xff]
        %v1315 = vld [vmem:[%s715 + $0x30] sm:$0xff]
        %v1316 = vld [vmem:[%s715 + $0x38] sm:$0xff]
        %v1317 = vld [vmem:[%s715 + $0x40] sm:$0xff]
        %v1318 = vld [vmem:[%s715 + $0x48] sm:$0xff]
        %v1319 = vld [vmem:[%s715 + $0x50] sm:$0xff]
        %v1320 = vld [vmem:[%s715 + $0x58] sm:$0xff]
        %v1321 = vld [vmem:[%s715 + $0x60] sm:$0xff]
        %v1322 = vld [vmem:[%s715 + $0x68] sm:$0xff]
        %v1323 = vld [vmem:[%s715 + $0x70] sm:$0xff]
        %v1324 = vld [vmem:[%s715 + $0x78] sm:$0xff]
        %v1325 = vld [vmem:[%s715 + $0x80] sm:$0xff]
        %v1326 = vld [vmem:[%s715 + $0x88] sm:$0xff]
        %v1327 = vld [vmem:[%s715 + $0x90] sm:$0xff]
        %v1328 = vld [vmem:[%s715 + $0x98] sm:$0xff]
        %v1329 = vld [vmem:[%s715 + $0xa0] sm:$0xff]
        %v1330 = vld [vmem:[%s715 + $0xa8] sm:$0xff]
        %v1331 = vld [vmem:[%s715 + $0xb0] sm:$0xff]
        %v1332 = vld [vmem:[%s715 + $0xb8] sm:$0xff]
        %v1333 = vld [vmem:[%s715 + $0xc0] sm:$0xff]
        %v1334 = vld [vmem:[%s715 + $0xc8] sm:$0xff]
        %v1335 = vld [vmem:[%s715 + $0xd0] sm:$0xff]
        %v1337 = vunpack.c.l.b16 %v1308
        %v1338 = vunpack.c.h.b16 %v1308
        %v1339 = vpack.c.b16 %v1337, %v1337
        %v1340 = vpack.c.b16 %v1338, %v1338
        %v1369 = vunpack.c.l.b16 %v1309
        %v1370 = vunpack.c.h.b16 %v1309
        %v1371 = vunpack.c.l.b16 %v1310
        %v1372 = vunpack.c.h.b16 %v1310
        %v1373 = vunpack.c.l.b16 %v1311
        %v1374 = vunpack.c.h.b16 %v1311
        %v1375 = vunpack.c.l.b16 %v1312
        %v1376 = vunpack.c.h.b16 %v1312
        %v1377 = vunpack.c.l.b16 %v1313
        %v1378 = vunpack.c.h.b16 %v1313
        %v1379 = vunpack.c.l.b16 %v1314
        %v1380 = vunpack.c.h.b16 %v1314
        %v1381 = vunpack.c.l.b16 %v1315
        %v1382 = vunpack.c.h.b16 %v1315
        %v1383 = vunpack.c.l.b16 %v1316
        %v1384 = vunpack.c.h.b16 %v1316
        %v1385 = vunpack.c.l.b16 %v1317
        %v1386 = vunpack.c.h.b16 %v1317
        %v1387 = vunpack.c.l.b16 %v1318
        %v1388 = vunpack.c.h.b16 %v1318
        %v1389 = vunpack.c.l.b16 %v1319
        %v1390 = vunpack.c.h.b16 %v1319
        %v1391 = vunpack.c.l.b16 %v1320
        %v1392 = vunpack.c.h.b16 %v1320
        %v1393 = vunpack.c.l.b16 %v1321
        %v1394 = vunpack.c.h.b16 %v1321
        %v1395 = vunpack.c.l.b16 %v1322
        %v1396 = vunpack.c.h.b16 %v1322
        %v1397 = vunpack.c.l.b16 %v1323
        %v1398 = vunpack.c.h.b16 %v1323
        %v1399 = vunpack.c.l.b16 %v1324
        %v1400 = vunpack.c.h.b16 %v1324
        %v1401 = vunpack.c.l.b16 %v1325
        %v1402 = vunpack.c.h.b16 %v1325
        %v1403 = vunpack.c.l.b16 %v1326
        %v1404 = vunpack.c.h.b16 %v1326
        %v1405 = vunpack.c.l.b16 %v1327
        %v1406 = vunpack.c.h.b16 %v1327
        %v1407 = vunpack.c.l.b16 %v1328
        %v1408 = vunpack.c.h.b16 %v1328
        %v1409 = vunpack.c.l.b16 %v1329
        %v1410 = vunpack.c.h.b16 %v1329
        %v1411 = vunpack.c.l.b16 %v1330
        %v1412 = vunpack.c.h.b16 %v1330
        %v1413 = vunpack.c.l.b16 %v1331
        %v1414 = vunpack.c.h.b16 %v1331
        %v1415 = vunpack.c.l.b16 %v1332
        %v1416 = vunpack.c.h.b16 %v1332
        %v1417 = vunpack.c.l.b16 %v1333
        %v1418 = vunpack.c.h.b16 %v1333
        %v1419 = vunpack.c.l.b16 %v1334
        %v1420 = vunpack.c.h.b16 %v1334
        %v1421 = vunpack.c.l.b16 %v1335
        %v1422 = vunpack.c.h.b16 %v1335
        %v1423 = vpack.c.b16 %v1371, %v1369
        %v1424 = vpack.c.b16 %v1372, %v1370
        %v1425 = vpack.c.b16 %v1375, %v1373
        %v1426 = vpack.c.b16 %v1376, %v1374
        %v1427 = vpack.c.b16 %v1379, %v1377
        %v1428 = vpack.c.b16 %v1380, %v1378
        %v1429 = vpack.c.b16 %v1383, %v1381
        %v1430 = vpack.c.b16 %v1384, %v1382
        %v1431 = vpack.c.b16 %v1387, %v1385
        %v1432 = vpack.c.b16 %v1388, %v1386
        %v1433 = vpack.c.b16 %v1391, %v1389
        %v1434 = vpack.c.b16 %v1392, %v1390
        %v1435 = vpack.c.b16 %v1395, %v1393
        %v1436 = vpack.c.b16 %v1396, %v1394
        %v1437 = vpack.c.b16 %v1399, %v1397
        %v1438 = vpack.c.b16 %v1400, %v1398
        %v1439 = vpack.c.b16 %v1403, %v1401
        %v1440 = vpack.c.b16 %v1404, %v1402
        %v1441 = vpack.c.b16 %v1407, %v1405
        %v1442 = vpack.c.b16 %v1408, %v1406
        %v1443 = vpack.c.b16 %v1411, %v1409
        %v1444 = vpack.c.b16 %v1412, %v1410
        %v1445 = vpack.c.b16 %v1415, %v1413
        %v1446 = vpack.c.b16 %v1416, %v1414
        %v1447 = vpack.c.b16 %v1419, %v1417
        %v1448 = vpack.c.b16 %v1420, %v1418
        %v1449 = vpack.c.b16 %v1421, %v1421
        %v1450 = vpack.c.b16 %v1422, %v1422
        %v1478 = vsel %vm1243, %v1340, 0
        %v1481 = vsel %vm1247, %v1449, 0
        %v1484 = vsel %vm1247, %v1450, 0
        %1486 = vmatpush.bf16.msra.mxu0 %v1437
        %1487 = vmatpush.bf16.msra.mxu0 %v1435
        %1488 = vmatpush.bf16.msra.mxu0 %v1433
        %1489 = vmatpush.bf16.msra.mxu0 %v1431
        %1490 = vmatpush.bf16.msra.mxu0 %v1429
        %1491 = vmatpush.bf16.msra.mxu0 %v1427
        %1492 = vmatpush.bf16.msra.mxu0 %v1425
        %1493 = vmatpush.bf16.msra.mxu0 %v1423
        %1494 = vmatmul.bf16.gmra.mxu0 %v1339
        %v1495 = vpop.f32.mrf.mxu0
        %v1496 = vadd.f32 %v1100, %v1495
        %v1497 = vpop.f32.mrf.mxu0
        %1498 = vdwg.mxu0
        %1499 = vmatpush.bf16.msra.mxu0 0
        %1500 = vmatpush.bf16.msra.mxu0 0
        %1501 = vmatpush.bf16.msra.mxu0 %v1481
        %1502 = vmatpush.bf16.msra.mxu0 %v1447
        %1503 = vmatpush.bf16.msra.mxu0 %v1445
        %1504 = vmatpush.bf16.msra.mxu0 %v1443
        %1505 = vmatpush.bf16.msra.mxu0 %v1441
        %1506 = vmatpush.bf16.msra.mxu0 %v1439
        %1507 = vmatmul.bf16.gmra.mxu0 %v1478
        %v1508 = vpop.f32.mrf.mxu0
        %v1509 = vadd.f32 %v1496, %v1508
        %v1510 = vpop.f32.mrf.mxu0
        %1511 = vdwg.mxu0
        %1512 = vmatpush.bf16.msra.mxu0 %v1438
        %1513 = vmatpush.bf16.msra.mxu0 %v1436
        %1514 = vmatpush.bf16.msra.mxu0 %v1434
        %1515 = vmatpush.bf16.msra.mxu0 %v1432
        %1516 = vmatpush.bf16.msra.mxu0 %v1430
        %1517 = vmatpush.bf16.msra.mxu0 %v1428
        %1518 = vmatpush.bf16.msra.mxu0 %v1426
        %1519 = vmatpush.bf16.msra.mxu0 %v1424
        %1520 = vmatmul.bf16.gmra.mxu0 %v1339
        %v1521 = vpop.f32.mrf.mxu0
        %v1522 = vadd.f32 %v1100, %v1521
        %v1523 = vpop.f32.mrf.mxu0
        %1524 = vdwg.mxu0
        %1525 = vmatpush.bf16.msra.mxu0 0
        %1526 = vmatpush.bf16.msra.mxu0 0
        %1527 = vmatpush.bf16.msra.mxu0 %v1484
        %1528 = vmatpush.bf16.msra.mxu0 %v1448
        %1529 = vmatpush.bf16.msra.mxu0 %v1446
        %1530 = vmatpush.bf16.msra.mxu0 %v1444
        %1531 = vmatpush.bf16.msra.mxu0 %v1442
        %1532 = vmatpush.bf16.msra.mxu0 %v1440
        %1533 = vmatmul.bf16.gmra.mxu0 %v1478
        %v1534 = vpop.f32.mrf.mxu0
        %v1535 = vadd.f32 %v1522, %v1534
        %v1536 = vpop.f32.mrf.mxu0
        %1537 = vdwg.mxu0
        %v1538 = vpack.c.bf16 %v1535, %v1509
        %1539 = vst [vmem:[%s291 + $0x8] sm:$0xff] %v1538
        %s1540 = sand.u32 %s159, 1
        %s1541 = scalar_lea.sflag [#allocation6], %s1540
        %s1542 = sand.u32 %s159, 1
        %s1543 = smul.addr %s1542, 16
        %s1544 = scalar_lea.vmem [#allocation9], %s1543
        // Predicated region
        $region49: #{tpu_custom_call.1} parent=35 // pred_check
          %p1545 = pneg %p169
        $region50: #{tpu_custom_call.1} parent=35 // pred_check_branch
          %1547 = sbr.rel (%p1545) target = $region52
        $region51: #{tpu_custom_call.1} parent=35 // pred_region
          %s1548 = smul.u32 4, %s29
          %1550 = vsyncadd %s1541, 0
          %s1551 = smul.addr %s28, 4
          %s1552 = sadd.s32 %s1548, %s1551
          %s1553 = smul.addr %s27, 4
          %s1554 = sadd.s32 %s1552, %s1553
          %s1555 = smul.addr %s1554, 4
          %s1556 = scalar_lea.hbm %s4, %s1555
          %s1558 = sshll.u32 %s1544, 4
          %s1559 = int_to_ptr.vmem [resolvable:$true] %s1558
          %s1560 = sshll.u32 %s1556, 4
          %s1561 = int_to_ptr.hbm [resolvable:$true] %s1560
          %1563 = dma.vmem_to_hbm [thread:$0]  %s1559, 256, %s1561, %s1541
        $region52: #{tpu_custom_call.1} parent=35 // pred_fallthru
          _
      $region36: #{tpu_custom_call.1} parent=5 // pred_fallthru
        _
      %p1564 = scmp.le.s32.totalorder 2, %s17
      // Predicated region
      $region53: #{tpu_custom_call.1} parent=5 // pred_check
        %p1565 = pneg %p1564
      $region54: #{tpu_custom_call.1} parent=5 // pred_check_branch
        %1567 = sbr.rel (%p1565) target = $region56
      $region55: #{tpu_custom_call.1} parent=5 // pred_region
        %s1568 = ssub.s32 %s17, 2
        // Predicated region
        $region57: #{tpu_custom_call.1} parent=55 // pred_check
          %p1569 = pneg %p175
        $region58: #{tpu_custom_call.1} parent=55 // pred_check_branch
          %1571 = sbr.rel (%p1569) target = $region60
        $region59: #{tpu_custom_call.1} parent=55 // pred_region
          %s1572 = sand.u32 %s160, 1
          %s1573 = scalar_lea.sflag [#allocation6], %s1572
          %s1574 = sand.u32 %s160, 1
          %s1575 = smul.addr %s1574, 16
          %s1576 = scalar_lea.vmem [#allocation9], %s1575
          %1578 = dma.done %s1573, 256
        $region60: #{tpu_custom_call.1} parent=55 // pred_fallthru
          _
      $region56: #{tpu_custom_call.1} parent=5 // pred_fallthru
        _
    $region6: #{tpu_custom_call.1} parent=1 // loop_footer
      %s21 = sadd.s32 1, %s17
    $region7: #{tpu_custom_call.1} parent=1 // loop_footer_branch
      %16 = sbr.rel target = $region3
    $region8: #{tpu_custom_call.1} parent=1 // loop_exit
      _
    %1579 = vsyncpa [#allocation5], 1
    %s1580 = scalar_lea.sflag [#allocation5], 1
    %1581 = vsyncpa %s1580, 1
    %1582 = vsyncpa [#allocation8], 1
    %s1583 = scalar_lea.sflag [#allocation8], 1
    %1584 = vsyncpa %s1583, 1
    %1585 = vsyncpa [#allocation6], 1
    %s1586 = scalar_lea.sflag [#allocation6], 1
    %1587 = vsyncpa %s1586, 1

</llo_original>
